<compile_context>
chip_gen: v6e
topology: v6e:2x2x1
jax: 0.10.0
libtpu: 0.0.40
codegen_flags: <defaults>
</compile_context>

<pallas_src>
import functools

import jax
import jax.numpy as jnp
from jax.experimental import pallas as pl
from jax.experimental.pallas import tpu as pltpu

STATE_DIM = 32
ACTION_DIM = 4
H1 = 128      # fc1 out
H2 = 256      # fc2 out / lstm input
HL = 128      # lstm hidden
NEG_SLOPE = 0.01  # F.leaky_relu default


def _leaky_relu(x):
    return jnp.where(x >= 0, x, NEG_SLOPE * x)


def actor_kernel(x_ref, w1_ref, b1_ref, w2_ref, b2_ref,
                 wih_ref, whh_ref, blstm_ref,
                 wact_ref, bact_ref, h0_ref, c0_ref,
                 prob_ref, hout_ref, cout_ref,
                 hseq_ref, *, seq_len):
    # ---- MLP: fc1 -> leaky_relu -> fc2 -> leaky_relu ------------------------
    # bf16 MXU operands, f32 accumulation.
    x = x_ref[...].astype(jnp.bfloat16)                              # (T, S)
    a1 = _leaky_relu(
        jnp.dot(x, w1_ref[...], preferred_element_type=jnp.float32) + b1_ref[...])
    a2 = _leaky_relu(
        jnp.dot(a1.astype(jnp.bfloat16), w2_ref[...],
                preferred_element_type=jnp.float32) + b2_ref[...])

    # ---- batched input-to-hidden projection (hoisted out of recurrence) -----
    # (T, 256) @ (256, 4*128) + bias -> (T, 512); gate cols are [g, i, f, o].
    gate_x = (jnp.dot(a2.astype(jnp.bfloat16), wih_ref[...],
                      preferred_element_type=jnp.float32) + blstm_ref[...])

    # ---- LSTM recurrence over T timesteps (batch = 1), statically unrolled --
    whh = whh_ref[...]                                               # (128, 512) bf16
    h = h0_ref[...]                                                  # (1, 128) f32
    c = c0_ref[...]                                                  # (1, 128) f32
    for t in range(seq_len):                                         # static unroll
        gates = gate_x[t:t + 1, :] + jnp.dot(
            h.astype(jnp.bfloat16), whh,
            preferred_element_type=jnp.float32)                      # (1, 512) f32
        g = jnp.tanh(gates[:, :HL])                                  # tanh block first
        sig = jax.nn.sigmoid(gates[:, HL:4 * HL])                    # [i | f | o]
        i = sig[:, 0 * HL:1 * HL]
        f = sig[:, 1 * HL:2 * HL]
        o = sig[:, 2 * HL:3 * HL]
        c = f * c + i * g
        h = o * jnp.tanh(c)
        hseq_ref[pl.ds(t, 1), :] = h                                 # idle vst slot

    hout_ref[...] = h
    cout_ref[...] = c

    # ---- fc_actor + exact softmax(dim=-1) ------------------------------------
    hseq = hseq_ref[...]                                             # (T, 128)
    logits = (jnp.dot(hseq, wact_ref[...],
                      preferred_element_type=jnp.float32) + bact_ref[...])
    m = jnp.max(logits, axis=-1, keepdims=True)
    e = jnp.exp(logits - m)
    prob_ref[...] = e / jnp.sum(e, axis=-1, keepdims=True)           # exact divide


def _permute_gates_ifgo_to_gifo(w):
    """Permute last-dim gate blocks from PyTorch [i, f, g, o] to [g, i, f, o]."""
    i, f, g, o = jnp.split(w, 4, axis=-1)
    return jnp.concatenate([g, i, f, o], axis=-1)


def make_params(key, state_dim=STATE_DIM, action_dim=ACTION_DIM):
    """Deterministic init mimicking PyTorch's U(-1/sqrt(fan_in), 1/sqrt(fan_in)).

    LSTM weights/bias are generated in PyTorch's [i, f, g, o] gate order and
    permuted once (free, wrapper-side) to the kernel's [g, i, f, o] layout.
    Matmul weights are stored bf16 (MXU operands); biases stay f32.
    """
    ks = jax.random.split(key, 10)

    def u(k, shape, fan_in):
        bound = 1.0 / jnp.sqrt(jnp.float32(fan_in))
        return jax.random.uniform(k, shape, jnp.float32, -bound, bound)

    wih = u(ks[4], (H2, 4 * HL), HL)
    whh = u(ks[5], (HL, 4 * HL), HL)
    blstm = u(ks[6], (1, 4 * HL), HL) + u(ks[7], (1, 4 * HL), HL)    # b_ih + b_hh

    params = {
        # stored transposed: (in, out)
        "w1": u(ks[0], (state_dim, H1), state_dim).astype(jnp.bfloat16),
        "b1": u(ks[1], (1, H1), state_dim),
        "w2": u(ks[2], (H1, H2), H1).astype(jnp.bfloat16),
        "b2": u(ks[3], (1, H2), H1),
        # LSTM, gate columns permuted to [g, i, f, o] for the kernel
        "wih": _permute_gates_ifgo_to_gifo(wih).astype(jnp.bfloat16),
        "whh": _permute_gates_ifgo_to_gifo(whh).astype(jnp.bfloat16),
        "blstm": _permute_gates_ifgo_to_gifo(blstm),
        "wact": u(ks[8], (HL, action_dim), HL),
        "bact": u(ks[9], (1, action_dim), HL),
    }
    return params


def _actor_forward(x, hidden, params):
    """x: (T, state_dim) f32; hidden: (h0, c0) each (1, 1, 128) f32."""
    h0, c0 = hidden
    T = x.shape[0]
    action_dim = params["wact"].shape[1]

    out_shape = (
        jax.ShapeDtypeStruct((T, action_dim), jnp.float32),    # probs
        jax.ShapeDtypeStruct((1, HL), jnp.float32),            # h_out
        jax.ShapeDtypeStruct((1, HL), jnp.float32),            # c_out
    )
    vmem = pl.BlockSpec(memory_space=pltpu.MemorySpace.VMEM)
    kernel = functools.partial(actor_kernel, seq_len=T)
    prob, h_out, c_out = pl.pallas_call(
        kernel,
        out_shape=out_shape,
        in_specs=[vmem] * 12,
        out_specs=(vmem, vmem, vmem),
        scratch_shapes=[pltpu.VMEM((T, HL), jnp.float32)],     # stacked h_t
        input_output_aliases={10: 1, 11: 2},                   # h0->h_out, c0->c_out
    )(x,
      params["w1"], params["b1"], params["w2"], params["b2"],
      params["wih"], params["whh"], params["blstm"],
      params["wact"], params["bact"],
      h0.reshape(1, HL), c0.reshape(1, HL))

    # match PyTorch output shapes: (T, 1, action_dim), ((1,1,128), (1,1,128))
    return prob.reshape(T, 1, action_dim), (h_out.reshape(1, 1, HL),
                                            c_out.reshape(1, 1, HL))


# Single jit over the whole wrapper (reshapes + kernel) — the workload is
# dispatch-bound, so fusing the glue ops under one compiled call matters more
# than any in-kernel micro-tuning.
actor_forward = jax.jit(_actor_forward)


if __name__ == "__main__":
    key = jax.random.PRNGKey(0)
    k_param, k_x = jax.random.split(key)

    T = 8  # sequence length (rows of x)
    params = make_params(k_param)
    x = jax.random.normal(k_x, (T, STATE_DIM), dtype=jnp.float32)
    h0 = jnp.zeros((1, 1, HL), jnp.float32)
    c0 = jnp.zeros((1, 1, HL), jnp.float32)

    prob, (h_out, c_out) = actor_forward(x, (h0, c0), params)
    jax.block_until_ready((prob, h_out, c_out))

    # sanity: shapes + exact-softmax rows sum to 1
    assert prob.shape == (T, 1, ACTION_DIM)
    assert h_out.shape == (1, 1, HL) and c_out.shape == (1, 1, HL)
    assert bool(jnp.allclose(jnp.sum(prob, axis=2), 1.0, atol=1e-5))
    assert bool(jnp.all(prob >= 0.0))
    print("KERNEL_OK")
</pallas_src>

<mosaic_0001>
module attributes {stable_mosaic.version = 11 : i64} {
  func.func @actor_kernel(%arg0: memref<8x32xf32, #tpu.memory_space<vmem>>, %arg1: memref<32x128xbf16, #tpu.memory_space<vmem>>, %arg2: memref<1x128xf32, #tpu.memory_space<vmem>>, %arg3: memref<128x256xbf16, #tpu.memory_space<vmem>>, %arg4: memref<1x256xf32, #tpu.memory_space<vmem>>, %arg5: memref<256x512xbf16, #tpu.memory_space<vmem>>, %arg6: memref<128x512xbf16, #tpu.memory_space<vmem>>, %arg7: memref<1x512xf32, #tpu.memory_space<vmem>>, %arg8: memref<128x4xf32, #tpu.memory_space<vmem>>, %arg9: memref<1x4xf32, #tpu.memory_space<vmem>>, %arg10: memref<1x128xf32, #tpu.memory_space<vmem>>, %arg11: memref<1x128xf32, #tpu.memory_space<vmem>>, %arg12: memref<8x4xf32, #tpu.memory_space<vmem>>, %arg13: memref<1x128xf32, #tpu.memory_space<vmem>>, %arg14: memref<1x128xf32, #tpu.memory_space<vmem>>, %arg15: memref<8x128xf32, #tpu.memory_space<vmem>>) attributes {dimension_semantics = [], scalar_prefetch = 0 : i64, scratch_operands = 1 : i64, tpu.core_type = #tpu.core_type<tc>} {
    %c0 = arith.constant 0 : index
    %c0_0 = arith.constant 0 : index
    %0 = vector.load %arg0[%c0, %c0_0] : memref<8x32xf32, #tpu.memory_space<vmem>>, vector<8x32xf32>
    %1 = arith.truncf %0 : vector<8x32xf32> to vector<8x32xbf16>
    %c0_1 = arith.constant 0 : index
    %c0_2 = arith.constant 0 : index
    %2 = vector.load %arg1[%c0_1, %c0_2] : memref<32x128xbf16, #tpu.memory_space<vmem>>, vector<32x128xbf16>
    %cst = arith.constant dense<0.000000e+00> : vector<8x128xf32>
    %3 = tpu.matmul %1, %2, %cst {dimension_numbers = #tpu.dot_dimension_numbers<[1], [0], [0], [1], [0, 0, 1, 1], [], []>} : vector<8x32xbf16>, vector<32x128xbf16>, vector<8x128xf32> -> vector<8x128xf32>
    %c0_3 = arith.constant 0 : index
    %c0_4 = arith.constant 0 : index
    %4 = vector.load %arg2[%c0_3, %c0_4] : memref<1x128xf32, #tpu.memory_space<vmem>>, vector<1x128xf32>
    %5 = vector.broadcast %4 : vector<1x128xf32> to vector<8x128xf32>
    %6 = arith.addf %3, %5 : vector<8x128xf32>
    %cst_5 = arith.constant 0.000000e+00 : f32
    %7 = vector.broadcast %cst_5 : f32 to vector<8x128xf32>
    %8 = arith.cmpf oge, %6, %7 : vector<8x128xf32>
    %cst_6 = arith.constant 0.00999999977 : f32
    %9 = vector.broadcast %cst_6 : f32 to vector<8x128xf32>
    %10 = arith.mulf %9, %6 : vector<8x128xf32>
    %11 = arith.select %8, %6, %10 : vector<8x128xi1>, vector<8x128xf32>
    %12 = arith.truncf %11 : vector<8x128xf32> to vector<8x128xbf16>
    %c0_7 = arith.constant 0 : index
    %c0_8 = arith.constant 0 : index
    %13 = vector.load %arg3[%c0_7, %c0_8] : memref<128x256xbf16, #tpu.memory_space<vmem>>, vector<128x256xbf16>
    %cst_9 = arith.constant dense<0.000000e+00> : vector<8x256xf32>
    %14 = tpu.matmul %12, %13, %cst_9 {dimension_numbers = #tpu.dot_dimension_numbers<[1], [0], [0], [1], [0, 0, 1, 1], [], []>} : vector<8x128xbf16>, vector<128x256xbf16>, vector<8x256xf32> -> vector<8x256xf32>
    %c0_10 = arith.constant 0 : index
    %c0_11 = arith.constant 0 : index
    %15 = vector.load %arg4[%c0_10, %c0_11] : memref<1x256xf32, #tpu.memory_space<vmem>>, vector<1x256xf32>
    %16 = vector.broadcast %15 : vector<1x256xf32> to vector<8x256xf32>
    %17 = arith.addf %14, %16 : vector<8x256xf32>
    %cst_12 = arith.constant 0.000000e+00 : f32
    %18 = vector.broadcast %cst_12 : f32 to vector<8x256xf32>
    %19 = arith.cmpf oge, %17, %18 : vector<8x256xf32>
    %cst_13 = arith.constant 0.00999999977 : f32
    %20 = vector.broadcast %cst_13 : f32 to vector<8x256xf32>
    %21 = arith.mulf %20, %17 : vector<8x256xf32>
    %22 = arith.select %19, %17, %21 : vector<8x256xi1>, vector<8x256xf32>
    %23 = arith.truncf %22 : vector<8x256xf32> to vector<8x256xbf16>
    %c0_14 = arith.constant 0 : index
    %c0_15 = arith.constant 0 : index
    %24 = vector.load %arg5[%c0_14, %c0_15] : memref<256x512xbf16, #tpu.memory_space<vmem>>, vector<256x512xbf16>
    %cst_16 = arith.constant dense<0.000000e+00> : vector<8x512xf32>
    %25 = tpu.matmul %23, %24, %cst_16 {dimension_numbers = #tpu.dot_dimension_numbers<[1], [0], [0], [1], [0, 0, 1, 1], [], []>} : vector<8x256xbf16>, vector<256x512xbf16>, vector<8x512xf32> -> vector<8x512xf32>
    %c0_17 = arith.constant 0 : index
    %c0_18 = arith.constant 0 : index
    %26 = vector.load %arg7[%c0_17, %c0_18] : memref<1x512xf32, #tpu.memory_space<vmem>>, vector<1x512xf32>
    %27 = vector.broadcast %26 : vector<1x512xf32> to vector<8x512xf32>
    %28 = arith.addf %25, %27 : vector<8x512xf32>
    %c0_19 = arith.constant 0 : index
    %c0_20 = arith.constant 0 : index
    %29 = vector.load %arg6[%c0_19, %c0_20] : memref<128x512xbf16, #tpu.memory_space<vmem>>, vector<128x512xbf16>
    %c0_21 = arith.constant 0 : index
    %c0_22 = arith.constant 0 : index
    %30 = vector.load %arg10[%c0_21, %c0_22] : memref<1x128xf32, #tpu.memory_space<vmem>>, vector<1x128xf32>
    %c0_23 = arith.constant 0 : index
    %c0_24 = arith.constant 0 : index
    %31 = vector.load %arg11[%c0_23, %c0_24] : memref<1x128xf32, #tpu.memory_space<vmem>>, vector<1x128xf32>
    %32 = vector.extract_strided_slice %28 {offsets = [0, 0], sizes = [1, 512], strides = [1, 1]} : vector<8x512xf32> to vector<1x512xf32>
    %33 = arith.truncf %30 : vector<1x128xf32> to vector<1x128xbf16>
    %cst_25 = arith.constant dense<0.000000e+00> : vector<1x512xf32>
    %34 = tpu.matmul %33, %29, %cst_25 {dimension_numbers = #tpu.dot_dimension_numbers<[1], [0], [0], [1], [0, 0, 1, 1], [], []>} : vector<1x128xbf16>, vector<128x512xbf16>, vector<1x512xf32> -> vector<1x512xf32>
    %35 = arith.addf %32, %34 : vector<1x512xf32>
    %36 = vector.extract_strided_slice %35 {offsets = [0, 0], sizes = [1, 128], strides = [1, 1]} : vector<1x512xf32> to vector<1x128xf32>
    %37 = math.tanh %36 : vector<1x128xf32>
    %38 = vector.extract_strided_slice %35 {offsets = [0, 128], sizes = [1, 384], strides = [1, 1]} : vector<1x512xf32> to vector<1x384xf32>
    %39 = arith.negf %38 : vector<1x384xf32>
    %40 = math.exp %39 : vector<1x384xf32>
    %cst_26 = arith.constant 1.000000e+00 : f32
    %41 = vector.broadcast %cst_26 : f32 to vector<1x384xf32>
    %42 = arith.addf %41, %40 : vector<1x384xf32>
    %43 = arith.divf %41, %42 : vector<1x384xf32>
    %44 = vector.extract_strided_slice %43 {offsets = [0, 0], sizes = [1, 128], strides = [1, 1]} : vector<1x384xf32> to vector<1x128xf32>
    %45 = vector.extract_strided_slice %43 {offsets = [0, 128], sizes = [1, 128], strides = [1, 1]} : vector<1x384xf32> to vector<1x128xf32>
    %46 = vector.extract_strided_slice %43 {offsets = [0, 256], sizes = [1, 128], strides = [1, 1]} : vector<1x384xf32> to vector<1x128xf32>
    %47 = arith.mulf %45, %31 : vector<1x128xf32>
    %48 = arith.mulf %44, %37 : vector<1x128xf32>
    %49 = arith.addf %47, %48 : vector<1x128xf32>
    %50 = math.tanh %49 : vector<1x128xf32>
    %51 = arith.mulf %46, %50 : vector<1x128xf32>
    %c0_27 = arith.constant 0 : index
    %c0_28 = arith.constant 0 : index
    %52 = vector.load %arg15[%c0_27, %c0_28] : memref<8x128xf32, #tpu.memory_space<vmem>>, vector<1x128xf32>
    tpu.vector_store %arg15[%c0_27, %c0_28], %51 {strides = array<i32>} : memref<8x128xf32, #tpu.memory_space<vmem>>, vector<1x128xf32>,
    %53 = vector.extract_strided_slice %28 {offsets = [1, 0], sizes = [1, 512], strides = [1, 1]} : vector<8x512xf32> to vector<1x512xf32>
    %54 = arith.truncf %51 : vector<1x128xf32> to vector<1x128xbf16>
    %cst_29 = arith.constant dense<0.000000e+00> : vector<1x512xf32>
    %55 = tpu.matmul %54, %29, %cst_29 {dimension_numbers = #tpu.dot_dimension_numbers<[1], [0], [0], [1], [0, 0, 1, 1], [], []>} : vector<1x128xbf16>, vector<128x512xbf16>, vector<1x512xf32> -> vector<1x512xf32>
    %56 = arith.addf %53, %55 : vector<1x512xf32>
    %57 = vector.extract_strided_slice %56 {offsets = [0, 0], sizes = [1, 128], strides = [1, 1]} : vector<1x512xf32> to vector<1x128xf32>
    %58 = math.tanh %57 : vector<1x128xf32>
    %59 = vector.extract_strided_slice %56 {offsets = [0, 128], sizes = [1, 384], strides = [1, 1]} : vector<1x512xf32> to vector<1x384xf32>
    %60 = arith.negf %59 : vector<1x384xf32>
    %61 = math.exp %60 : vector<1x384xf32>
    %cst_30 = arith.constant 1.000000e+00 : f32
    %62 = vector.broadcast %cst_30 : f32 to vector<1x384xf32>
    %63 = arith.addf %62, %61 : vector<1x384xf32>
    %64 = arith.divf %62, %63 : vector<1x384xf32>
    %65 = vector.extract_strided_slice %64 {offsets = [0, 0], sizes = [1, 128], strides = [1, 1]} : vector<1x384xf32> to vector<1x128xf32>
    %66 = vector.extract_strided_slice %64 {offsets = [0, 128], sizes = [1, 128], strides = [1, 1]} : vector<1x384xf32> to vector<1x128xf32>
    %67 = vector.extract_strided_slice %64 {offsets = [0, 256], sizes = [1, 128], strides = [1, 1]} : vector<1x384xf32> to vector<1x128xf32>
    %68 = arith.mulf %66, %49 : vector<1x128xf32>
    %69 = arith.mulf %65, %58 : vector<1x128xf32>
    %70 = arith.addf %68, %69 : vector<1x128xf32>
    %71 = math.tanh %70 : vector<1x128xf32>
    %72 = arith.mulf %67, %71 : vector<1x128xf32>
    %c1 = arith.constant 1 : index
    %c0_31 = arith.constant 0 : index
    %73 = vector.load %arg15[%c1, %c0_31] : memref<8x128xf32, #tpu.memory_space<vmem>>, vector<1x128xf32>
    tpu.vector_store %arg15[%c1, %c0_31], %72 {strides = array<i32>} : memref<8x128xf32, #tpu.memory_space<vmem>>, vector<1x128xf32>,
    %74 = vector.extract_strided_slice %28 {offsets = [2, 0], sizes = [1, 512], strides = [1, 1]} : vector<8x512xf32> to vector<1x512xf32>
    %75 = arith.truncf %72 : vector<1x128xf32> to vector<1x128xbf16>
    %cst_32 = arith.constant dense<0.000000e+00> : vector<1x512xf32>
    %76 = tpu.matmul %75, %29, %cst_32 {dimension_numbers = #tpu.dot_dimension_numbers<[1], [0], [0], [1], [0, 0, 1, 1], [], []>} : vector<1x128xbf16>, vector<128x512xbf16>, vector<1x512xf32> -> vector<1x512xf32>
    %77 = arith.addf %74, %76 : vector<1x512xf32>
    %78 = vector.extract_strided_slice %77 {offsets = [0, 0], sizes = [1, 128], strides = [1, 1]} : vector<1x512xf32> to vector<1x128xf32>
    %79 = math.tanh %78 : vector<1x128xf32>
    %80 = vector.extract_strided_slice %77 {offsets = [0, 128], sizes = [1, 384], strides = [1, 1]} : vector<1x512xf32> to vector<1x384xf32>
    %81 = arith.negf %80 : vector<1x384xf32>
    %82 = math.exp %81 : vector<1x384xf32>
    %cst_33 = arith.constant 1.000000e+00 : f32
    %83 = vector.broadcast %cst_33 : f32 to vector<1x384xf32>
    %84 = arith.addf %83, %82 : vector<1x384xf32>
    %85 = arith.divf %83, %84 : vector<1x384xf32>
    %86 = vector.extract_strided_slice %85 {offsets = [0, 0], sizes = [1, 128], strides = [1, 1]} : vector<1x384xf32> to vector<1x128xf32>
    %87 = vector.extract_strided_slice %85 {offsets = [0, 128], sizes = [1, 128], strides = [1, 1]} : vector<1x384xf32> to vector<1x128xf32>
    %88 = vector.extract_strided_slice %85 {offsets = [0, 256], sizes = [1, 128], strides = [1, 1]} : vector<1x384xf32> to vector<1x128xf32>
    %89 = arith.mulf %87, %70 : vector<1x128xf32>
    %90 = arith.mulf %86, %79 : vector<1x128xf32>
    %91 = arith.addf %89, %90 : vector<1x128xf32>
    %92 = math.tanh %91 : vector<1x128xf32>
    %93 = arith.mulf %88, %92 : vector<1x128xf32>
    %c2 = arith.constant 2 : index
    %c0_34 = arith.constant 0 : index
    %94 = vector.load %arg15[%c2, %c0_34] : memref<8x128xf32, #tpu.memory_space<vmem>>, vector<1x128xf32>
    tpu.vector_store %arg15[%c2, %c0_34], %93 {strides = array<i32>} : memref<8x128xf32, #tpu.memory_space<vmem>>, vector<1x128xf32>,
    %95 = vector.extract_strided_slice %28 {offsets = [3, 0], sizes = [1, 512], strides = [1, 1]} : vector<8x512xf32> to vector<1x512xf32>
    %96 = arith.truncf %93 : vector<1x128xf32> to vector<1x128xbf16>
    %cst_35 = arith.constant dense<0.000000e+00> : vector<1x512xf32>
    %97 = tpu.matmul %96, %29, %cst_35 {dimension_numbers = #tpu.dot_dimension_numbers<[1], [0], [0], [1], [0, 0, 1, 1], [], []>} : vector<1x128xbf16>, vector<128x512xbf16>, vector<1x512xf32> -> vector<1x512xf32>
    %98 = arith.addf %95, %97 : vector<1x512xf32>
    %99 = vector.extract_strided_slice %98 {offsets = [0, 0], sizes = [1, 128], strides = [1, 1]} : vector<1x512xf32> to vector<1x128xf32>
    %100 = math.tanh %99 : vector<1x128xf32>
    %101 = vector.extract_strided_slice %98 {offsets = [0, 128], sizes = [1, 384], strides = [1, 1]} : vector<1x512xf32> to vector<1x384xf32>
    %102 = arith.negf %101 : vector<1x384xf32>
    %103 = math.exp %102 : vector<1x384xf32>
    %cst_36 = arith.constant 1.000000e+00 : f32
    %104 = vector.broadcast %cst_36 : f32 to vector<1x384xf32>
    %105 = arith.addf %104, %103 : vector<1x384xf32>
    %106 = arith.divf %104, %105 : vector<1x384xf32>
    %107 = vector.extract_strided_slice %106 {offsets = [0, 0], sizes = [1, 128], strides = [1, 1]} : vector<1x384xf32> to vector<1x128xf32>
    %108 = vector.extract_strided_slice %106 {offsets = [0, 128], sizes = [1, 128], strides = [1, 1]} : vector<1x384xf32> to vector<1x128xf32>
    %109 = vector.extract_strided_slice %106 {offsets = [0, 256], sizes = [1, 128], strides = [1, 1]} : vector<1x384xf32> to vector<1x128xf32>
    %110 = arith.mulf %108, %91 : vector<1x128xf32>
    %111 = arith.mulf %107, %100 : vector<1x128xf32>
    %112 = arith.addf %110, %111 : vector<1x128xf32>
    %113 = math.tanh %112 : vector<1x128xf32>
    %114 = arith.mulf %109, %113 : vector<1x128xf32>
    %c3 = arith.constant 3 : index
    %c0_37 = arith.constant 0 : index
    %115 = vector.load %arg15[%c3, %c0_37] : memref<8x128xf32, #tpu.memory_space<vmem>>, vector<1x128xf32>
    tpu.vector_store %arg15[%c3, %c0_37], %114 {strides = array<i32>} : memref<8x128xf32, #tpu.memory_space<vmem>>, vector<1x128xf32>,
    %116 = vector.extract_strided_slice %28 {offsets = [4, 0], sizes = [1, 512], strides = [1, 1]} : vector<8x512xf32> to vector<1x512xf32>
    %117 = arith.truncf %114 : vector<1x128xf32> to vector<1x128xbf16>
    %cst_38 = arith.constant dense<0.000000e+00> : vector<1x512xf32>
    %118 = tpu.matmul %117, %29, %cst_38 {dimension_numbers = #tpu.dot_dimension_numbers<[1], [0], [0], [1], [0, 0, 1, 1], [], []>} : vector<1x128xbf16>, vector<128x512xbf16>, vector<1x512xf32> -> vector<1x512xf32>
    %119 = arith.addf %116, %118 : vector<1x512xf32>
    %120 = vector.extract_strided_slice %119 {offsets = [0, 0], sizes = [1, 128], strides = [1, 1]} : vector<1x512xf32> to vector<1x128xf32>
    %121 = math.tanh %120 : vector<1x128xf32>
    %122 = vector.extract_strided_slice %119 {offsets = [0, 128], sizes = [1, 384], strides = [1, 1]} : vector<1x512xf32> to vector<1x384xf32>
    %123 = arith.negf %122 : vector<1x384xf32>
    %124 = math.exp %123 : vector<1x384xf32>
    %cst_39 = arith.constant 1.000000e+00 : f32
    %125 = vector.broadcast %cst_39 : f32 to vector<1x384xf32>
    %126 = arith.addf %125, %124 : vector<1x384xf32>
    %127 = arith.divf %125, %126 : vector<1x384xf32>
    %128 = vector.extract_strided_slice %127 {offsets = [0, 0], sizes = [1, 128], strides = [1, 1]} : vector<1x384xf32> to vector<1x128xf32>
    %129 = vector.extract_strided_slice %127 {offsets = [0, 128], sizes = [1, 128], strides = [1, 1]} : vector<1x384xf32> to vector<1x128xf32>
    %130 = vector.extract_strided_slice %127 {offsets = [0, 256], sizes = [1, 128], strides = [1, 1]} : vector<1x384xf32> to vector<1x128xf32>
    %131 = arith.mulf %129, %112 : vector<1x128xf32>
    %132 = arith.mulf %128, %121 : vector<1x128xf32>
    %133 = arith.addf %131, %132 : vector<1x128xf32>
    %134 = math.tanh %133 : vector<1x128xf32>
    %135 = arith.mulf %130, %134 : vector<1x128xf32>
    %c4 = arith.constant 4 : index
    %c0_40 = arith.constant 0 : index
    %136 = vector.load %arg15[%c4, %c0_40] : memref<8x128xf32, #tpu.memory_space<vmem>>, vector<1x128xf32>
    tpu.vector_store %arg15[%c4, %c0_40], %135 {strides = array<i32>} : memref<8x128xf32, #tpu.memory_space<vmem>>, vector<1x128xf32>,
    %137 = vector.extract_strided_slice %28 {offsets = [5, 0], sizes = [1, 512], strides = [1, 1]} : vector<8x512xf32> to vector<1x512xf32>
    %138 = arith.truncf %135 : vector<1x128xf32> to vector<1x128xbf16>
    %cst_41 = arith.constant dense<0.000000e+00> : vector<1x512xf32>
    %139 = tpu.matmul %138, %29, %cst_41 {dimension_numbers = #tpu.dot_dimension_numbers<[1], [0], [0], [1], [0, 0, 1, 1], [], []>} : vector<1x128xbf16>, vector<128x512xbf16>, vector<1x512xf32> -> vector<1x512xf32>
    %140 = arith.addf %137, %139 : vector<1x512xf32>
    %141 = vector.extract_strided_slice %140 {offsets = [0, 0], sizes = [1, 128], strides = [1, 1]} : vector<1x512xf32> to vector<1x128xf32>
    %142 = math.tanh %141 : vector<1x128xf32>
    %143 = vector.extract_strided_slice %140 {offsets = [0, 128], sizes = [1, 384], strides = [1, 1]} : vector<1x512xf32> to vector<1x384xf32>
    %144 = arith.negf %143 : vector<1x384xf32>
    %145 = math.exp %144 : vector<1x384xf32>
    %cst_42 = arith.constant 1.000000e+00 : f32
    %146 = vector.broadcast %cst_42 : f32 to vector<1x384xf32>
    %147 = arith.addf %146, %145 : vector<1x384xf32>
    %148 = arith.divf %146, %147 : vector<1x384xf32>
    %149 = vector.extract_strided_slice %148 {offsets = [0, 0], sizes = [1, 128], strides = [1, 1]} : vector<1x384xf32> to vector<1x128xf32>
    %150 = vector.extract_strided_slice %148 {offsets = [0, 128], sizes = [1, 128], strides = [1, 1]} : vector<1x384xf32> to vector<1x128xf32>
    %151 = vector.extract_strided_slice %148 {offsets = [0, 256], sizes = [1, 128], strides = [1, 1]} : vector<1x384xf32> to vector<1x128xf32>
    %152 = arith.mulf %150, %133 : vector<1x128xf32>
    %153 = arith.mulf %149, %142 : vector<1x128xf32>
    %154 = arith.addf %152, %153 : vector<1x128xf32>
    %155 = math.tanh %154 : vector<1x128xf32>
    %156 = arith.mulf %151, %155 : vector<1x128xf32>
    %c5 = arith.constant 5 : index
    %c0_43 = arith.constant 0 : index
    %157 = vector.load %arg15[%c5, %c0_43] : memref<8x128xf32, #tpu.memory_space<vmem>>, vector<1x128xf32>
    tpu.vector_store %arg15[%c5, %c0_43], %156 {strides = array<i32>} : memref<8x128xf32, #tpu.memory_space<vmem>>, vector<1x128xf32>,
    %158 = vector.extract_strided_slice %28 {offsets = [6, 0], sizes = [1, 512], strides = [1, 1]} : vector<8x512xf32> to vector<1x512xf32>
    %159 = arith.truncf %156 : vector<1x128xf32> to vector<1x128xbf16>
    %cst_44 = arith.constant dense<0.000000e+00> : vector<1x512xf32>
    %160 = tpu.matmul %159, %29, %cst_44 {dimension_numbers = #tpu.dot_dimension_numbers<[1], [0], [0], [1], [0, 0, 1, 1], [], []>} : vector<1x128xbf16>, vector<128x512xbf16>, vector<1x512xf32> -> vector<1x512xf32>
    %161 = arith.addf %158, %160 : vector<1x512xf32>
    %162 = vector.extract_strided_slice %161 {offsets = [0, 0], sizes = [1, 128], strides = [1, 1]} : vector<1x512xf32> to vector<1x128xf32>
    %163 = math.tanh %162 : vector<1x128xf32>
    %164 = vector.extract_strided_slice %161 {offsets = [0, 128], sizes = [1, 384], strides = [1, 1]} : vector<1x512xf32> to vector<1x384xf32>
    %165 = arith.negf %164 : vector<1x384xf32>
    %166 = math.exp %165 : vector<1x384xf32>
    %cst_45 = arith.constant 1.000000e+00 : f32
    %167 = vector.broadcast %cst_45 : f32 to vector<1x384xf32>
    %168 = arith.addf %167, %166 : vector<1x384xf32>
    %169 = arith.divf %167, %168 : vector<1x384xf32>
    %170 = vector.extract_strided_slice %169 {offsets = [0, 0], sizes = [1, 128], strides = [1, 1]} : vector<1x384xf32> to vector<1x128xf32>
    %171 = vector.extract_strided_slice %169 {offsets = [0, 128], sizes = [1, 128], strides = [1, 1]} : vector<1x384xf32> to vector<1x128xf32>
    %172 = vector.extract_strided_slice %169 {offsets = [0, 256], sizes = [1, 128], strides = [1, 1]} : vector<1x384xf32> to vector<1x128xf32>
    %173 = arith.mulf %171, %154 : vector<1x128xf32>
    %174 = arith.mulf %170, %163 : vector<1x128xf32>
    %175 = arith.addf %173, %174 : vector<1x128xf32>
    %176 = math.tanh %175 : vector<1x128xf32>
    %177 = arith.mulf %172, %176 : vector<1x128xf32>
    %c6 = arith.constant 6 : index
    %c0_46 = arith.constant 0 : index
    %178 = vector.load %arg15[%c6, %c0_46] : memref<8x128xf32, #tpu.memory_space<vmem>>, vector<1x128xf32>
    tpu.vector_store %arg15[%c6, %c0_46], %177 {strides = array<i32>} : memref<8x128xf32, #tpu.memory_space<vmem>>, vector<1x128xf32>,
    %179 = vector.extract_strided_slice %28 {offsets = [7, 0], sizes = [1, 512], strides = [1, 1]} : vector<8x512xf32> to vector<1x512xf32>
    %180 = arith.truncf %177 : vector<1x128xf32> to vector<1x128xbf16>
    %cst_47 = arith.constant dense<0.000000e+00> : vector<1x512xf32>
    %181 = tpu.matmul %180, %29, %cst_47 {dimension_numbers = #tpu.dot_dimension_numbers<[1], [0], [0], [1], [0, 0, 1, 1], [], []>} : vector<1x128xbf16>, vector<128x512xbf16>, vector<1x512xf32> -> vector<1x512xf32>
    %182 = arith.addf %179, %181 : vector<1x512xf32>
    %183 = vector.extract_strided_slice %182 {offsets = [0, 0], sizes = [1, 128], strides = [1, 1]} : vector<1x512xf32> to vector<1x128xf32>
    %184 = math.tanh %183 : vector<1x128xf32>
    %185 = vector.extract_strided_slice %182 {offsets = [0, 128], sizes = [1, 384], strides = [1, 1]} : vector<1x512xf32> to vector<1x384xf32>
    %186 = arith.negf %185 : vector<1x384xf32>
    %187 = math.exp %186 : vector<1x384xf32>
    %cst_48 = arith.constant 1.000000e+00 : f32
    %188 = vector.broadcast %cst_48 : f32 to vector<1x384xf32>
    %189 = arith.addf %188, %187 : vector<1x384xf32>
    %190 = arith.divf %188, %189 : vector<1x384xf32>
    %191 = vector.extract_strided_slice %190 {offsets = [0, 0], sizes = [1, 128], strides = [1, 1]} : vector<1x384xf32> to vector<1x128xf32>
    %192 = vector.extract_strided_slice %190 {offsets = [0, 128], sizes = [1, 128], strides = [1, 1]} : vector<1x384xf32> to vector<1x128xf32>
    %193 = vector.extract_strided_slice %190 {offsets = [0, 256], sizes = [1, 128], strides = [1, 1]} : vector<1x384xf32> to vector<1x128xf32>
    %194 = arith.mulf %192, %175 : vector<1x128xf32>
    %195 = arith.mulf %191, %184 : vector<1x128xf32>
    %196 = arith.addf %194, %195 : vector<1x128xf32>
    %197 = math.tanh %196 : vector<1x128xf32>
    %198 = arith.mulf %193, %197 : vector<1x128xf32>
    %c7 = arith.constant 7 : index
    %c0_49 = arith.constant 0 : index
    %199 = vector.load %arg15[%c7, %c0_49] : memref<8x128xf32, #tpu.memory_space<vmem>>, vector<1x128xf32>
    tpu.vector_store %arg15[%c7, %c0_49], %198 {strides = array<i32>} : memref<8x128xf32, #tpu.memory_space<vmem>>, vector<1x128xf32>,
    %c0_50 = arith.constant 0 : index
    %c0_51 = arith.constant 0 : index
    %200 = vector.load %arg13[%c0_50, %c0_51] : memref<1x128xf32, #tpu.memory_space<vmem>>, vector<1x128xf32>
    tpu.vector_store %arg13[%c0_50, %c0_51], %198 {strides = array<i32>} : memref<1x128xf32, #tpu.memory_space<vmem>>, vector<1x128xf32>,
    %c0_52 = arith.constant 0 : index
    %c0_53 = arith.constant 0 : index
    %201 = vector.load %arg14[%c0_52, %c0_53] : memref<1x128xf32, #tpu.memory_space<vmem>>, vector<1x128xf32>
    tpu.vector_store %arg14[%c0_52, %c0_53], %196 {strides = array<i32>} : memref<1x128xf32, #tpu.memory_space<vmem>>, vector<1x128xf32>,
    %c0_54 = arith.constant 0 : index
    %c0_55 = arith.constant 0 : index
    %202 = vector.load %arg15[%c0_54, %c0_55] : memref<8x128xf32, #tpu.memory_space<vmem>>, vector<8x128xf32>
    %c0_56 = arith.constant 0 : index
    %c0_57 = arith.constant 0 : index
    %203 = vector.load %arg8[%c0_56, %c0_57] : memref<128x4xf32, #tpu.memory_space<vmem>>, vector<128x4xf32>
    %cst_58 = arith.constant dense<0.000000e+00> : vector<8x4xf32>
    %204 = tpu.matmul %202, %203, %cst_58 {dimension_numbers = #tpu.dot_dimension_numbers<[1], [0], [0], [1], [0, 0, 1, 1], [], []>} : vector<8x128xf32>, vector<128x4xf32>, vector<8x4xf32> -> vector<8x4xf32>
    %c0_59 = arith.constant 0 : index
    %c0_60 = arith.constant 0 : index
    %205 = vector.load %arg9[%c0_59, %c0_60] : memref<1x4xf32, #tpu.memory_space<vmem>>, vector<1x4xf32>
    %206 = vector.broadcast %205 : vector<1x4xf32> to vector<8x4xf32>
    %207 = arith.addf %204, %206 : vector<8x4xf32>
    %cst_61 = arith.constant dense<0xFF800000> : vector<8xf32>
    %208 = vector.multi_reduction <maximumf>, %207, %cst_61 [1] : vector<8x4xf32> to vector<8xf32>
    %209 = vector.shape_cast %208 : vector<8xf32> to vector<8x1xf32>
    %210 = vector.broadcast %209 : vector<8x1xf32> to vector<8x4xf32>
    %211 = arith.subf %207, %210 : vector<8x4xf32>
    %212 = math.exp %211 : vector<8x4xf32>
    %cst_62 = arith.constant dense<0.000000e+00> : vector<8xf32>
    %213 = vector.multi_reduction <add>, %212, %cst_62 [1] : vector<8x4xf32> to vector<8xf32>
    %214 = vector.shape_cast %213 : vector<8xf32> to vector<8x1xf32>
    %215 = vector.broadcast %214 : vector<8x1xf32> to vector<8x4xf32>
    %216 = arith.divf %212, %215 : vector<8x4xf32>
    %c0_63 = arith.constant 0 : index
    %c0_64 = arith.constant 0 : index
    %217 = vector.load %arg12[%c0_63, %c0_64] : memref<8x4xf32, #tpu.memory_space<vmem>>, vector<8x4xf32>
    tpu.vector_store %arg12[%c0_63, %c0_64], %216 {strides = array<i32>} : memref<8x4xf32, #tpu.memory_space<vmem>>, vector<8x4xf32>,
    return
  }
}

</mosaic_0001>

<llo_original>
// kernel: _actor_forward.1
$region0: #{_actor_forward.1}
  #allocation0 [shape = 'u32[]', space=smem, size = 0x4, offset = 0x4, fixed_abs, tag = 'smem constant byte address 0x4 - core index']
  #allocation1 [shape = 'u32[144,128]{1,0:T(1,128)}', space=vmem, size = 0x12000, scoped, tag = 'internal scratch']
  #allocation2 [shape = 'f32[8,128]{1,0:T(8,128)}', space=vmem, size = 0x1000, scoped, tag = 'scratch operand']
  %s0 = inlined_call_operand.vmem [shape: f32[8,32], index: 0, kind: input, shape index: {}]
  %s1 = inlined_call_operand.vmem [shape: bf16[32,128], index: 1, kind: input, shape index: {}]
  %s2 = inlined_call_operand.hbm [shape: f32[1,128], index: 2, kind: input, shape index: {}]
  %s3 = inlined_call_operand.vmem [shape: bf16[128,256], index: 3, kind: input, shape index: {}]
  %s4 = inlined_call_operand.hbm [shape: f32[1,256], index: 4, kind: input, shape index: {}]
  %s5 = inlined_call_operand.hbm [shape: bf16[256,512], index: 5, kind: input, shape index: {}]
  %s6 = inlined_call_operand.hbm [shape: bf16[128,512], index: 6, kind: input, shape index: {}]
  %s7 = inlined_call_operand.hbm [shape: f32[1,512], index: 7, kind: input, shape index: {}]
  %s8 = inlined_call_operand.vmem [shape: f32[128,4], index: 8, kind: input, shape index: {}]
  %s9 = inlined_call_operand.hbm [shape: f32[1,4], index: 9, kind: input, shape index: {}]
  %s10 = inlined_call_operand.vmem [shape: f32[1,128], index: 10, kind: input, shape index: {}, may-alias: {10,13}]
  %s11 = inlined_call_operand.vmem [shape: f32[1,128], index: 11, kind: input, shape index: {}, may-alias: {11,14}]
  %s12 = inlined_call_operand.vmem [shape: f32[8,4], index: 12, kind: output, shape index: {0}]
  %s13 = inlined_call_operand.vmem [shape: f32[1,128], index: 13, kind: output, shape index: {1}, may-alias: {10,13}]
  %s14 = inlined_call_operand.vmem [shape: f32[1,128], index: 14, kind: output, shape index: {2}, may-alias: {11,14}]
  %15 = xla_tuple %s12, %s13, %s14
  %s16 = sld [smem:[#allocation0]]
  $region98: #{_actor_forward.1} parent=0
    _
  %s18 = ssub.s32 1, %s16
  %s19 = scalar_select 0, %s18, %s16
  $region1: #{_actor_forward.1} parent=0
    #allocation3 [shape = 'u8[512]{0}', space=vmem, size = 0x400, scoped, tag = 'input window, operand 2, single buffered']
    #allocation4 [shape = 's32[1]{0}', space=sflag, size = 0x4, scoped, tag = 'scoped memory for _actor_forward.1']
    #allocation5 [shape = 'u8[1024]{0}', space=vmem, size = 0x400, scoped, tag = 'input window, operand 4, single buffered']
    #allocation6 [shape = 's32[1]{0}', space=sflag, size = 0x4, scoped, tag = 'scoped memory for _actor_forward.1']
    #allocation7 [shape = 'u8[262144]{0}', space=vmem, size = 0x40000, scoped, tag = 'input window, operand 5, single buffered']
    #allocation8 [shape = 'u8[131072]{0}', space=vmem, size = 0x20000, scoped, tag = 'input window, operand 6, single buffered']
    #allocation9 [shape = 's32[1]{0}', space=sflag, size = 0x4, scoped, tag = 'scoped memory for _actor_forward.1']
    #allocation10 [shape = 'u8[2048]{0}', space=vmem, size = 0x800, scoped, tag = 'input window, operand 7, single buffered']
    #allocation11 [shape = 'u8[512]{0}', space=vmem, size = 0x400, scoped, tag = 'input window, operand 9, single buffered']
    #allocation12 [shape = 's32[1]{0}', space=sflag, size = 0x4, scoped, tag = 'scoped memory for _actor_forward.1']
    %20 = vsyncpa [#allocation4], 0
    %21 = vsyncpa [#allocation6], 0
    %22 = vsyncpa [#allocation9], 0
    %23 = vsyncpa [#allocation12], 0
    // Predicated region
    $region2: #{_actor_forward.1} parent=1 // pred_check
      _
    $region3: #{_actor_forward.1} parent=1 // pred_check_branch
      %25 = sbr.rel (0) target = $region5
    $region4: #{_actor_forward.1} parent=1 // pred_region
      _
    $region5: #{_actor_forward.1} parent=1 // pred_fallthru
      _
    // Predicated region
    $region6: #{_actor_forward.1} parent=1 // pred_check
      _
    $region7: #{_actor_forward.1} parent=1 // pred_check_branch
      %27 = sbr.rel (0) target = $region9
    $region8: #{_actor_forward.1} parent=1 // pred_region
      _
    $region9: #{_actor_forward.1} parent=1 // pred_fallthru
      _
    // Predicated region
    $region10: #{_actor_forward.1} parent=1 // pred_check
      _
    $region11: #{_actor_forward.1} parent=1 // pred_check_branch
      %29 = sbr.rel (0) target = $region13
    $region12: #{_actor_forward.1} parent=1 // pred_region
      %s31 = ssub.s32 16, 16
      %32 = vsyncadd [#allocation4], %s31
      %s34 = sshll.u32 [#allocation3], 4
      %s35 = int_to_ptr.vmem [resolvable:$true] %s34
      %37 = dma.hbm_to_vmem [thread:$0]  %s2, 16, %s35, [#allocation4]
    $region13: #{_actor_forward.1} parent=1 // pred_fallthru
      _
    // Predicated region
    $region14: #{_actor_forward.1} parent=1 // pred_check
      _
    $region15: #{_actor_forward.1} parent=1 // pred_check_branch
      %39 = sbr.rel (0) target = $region17
    $region16: #{_actor_forward.1} parent=1 // pred_region
      _
    $region17: #{_actor_forward.1} parent=1 // pred_fallthru
      _
    // Predicated region
    $region18: #{_actor_forward.1} parent=1 // pred_check
      _
    $region19: #{_actor_forward.1} parent=1 // pred_check_branch
      %41 = sbr.rel (0) target = $region21
    $region20: #{_actor_forward.1} parent=1 // pred_region
      %s43 = ssub.s32 32, 32
      %44 = vsyncadd [#allocation6], %s43
      %s46 = sshll.u32 [#allocation5], 4
      %s47 = int_to_ptr.vmem [resolvable:$true] %s46
      %49 = dma.hbm_to_vmem [thread:$0]  %s4, 32, %s47, [#allocation6]
    $region21: #{_actor_forward.1} parent=1 // pred_fallthru
      _
    // Predicated region
    $region22: #{_actor_forward.1} parent=1 // pred_check
      _
    $region23: #{_actor_forward.1} parent=1 // pred_check_branch
      %51 = sbr.rel (0) target = $region25
    $region24: #{_actor_forward.1} parent=1 // pred_region
      %s53 = ssub.s32 8192, 8192
      %54 = vsyncadd [#allocation6], %s53
      %s55 = sshll.u32 [#allocation7], 4
      %s56 = int_to_ptr.vmem [resolvable:$true] %s55
      %61 = dma.hbm_to_vmem [thread:$0]  %s5, 8192, %s56, [#allocation6], 256, 256, 16
    $region25: #{_actor_forward.1} parent=1 // pred_fallthru
      _
    // Predicated region
    $region26: #{_actor_forward.1} parent=1 // pred_check
      _
    $region27: #{_actor_forward.1} parent=1 // pred_check_branch
      %63 = sbr.rel (0) target = $region29
    $region28: #{_actor_forward.1} parent=1 // pred_region
      %s65 = ssub.s32 4096, 4096
      %66 = vsyncadd [#allocation9], %s65
      %s67 = sshll.u32 [#allocation8], 4
      %s68 = int_to_ptr.vmem [resolvable:$true] %s67
      %73 = dma.hbm_to_vmem [thread:$0]  %s6, 4096, %s68, [#allocation9], 256, 256, 16
    $region29: #{_actor_forward.1} parent=1 // pred_fallthru
      _
    // Predicated region
    $region30: #{_actor_forward.1} parent=1 // pred_check
      _
    $region31: #{_actor_forward.1} parent=1 // pred_check_branch
      %75 = sbr.rel (0) target = $region33
    $region32: #{_actor_forward.1} parent=1 // pred_region
      %s77 = ssub.s32 64, 64
      %78 = vsyncadd [#allocation9], %s77
      %s80 = sshll.u32 [#allocation10], 4
      %s81 = int_to_ptr.vmem [resolvable:$true] %s80
      %83 = dma.hbm_to_vmem [thread:$0]  %s7, 64, %s81, [#allocation9]
    $region33: #{_actor_forward.1} parent=1 // pred_fallthru
      _
    // Predicated region
    $region34: #{_actor_forward.1} parent=1 // pred_check
      _
    $region35: #{_actor_forward.1} parent=1 // pred_check_branch
      %85 = sbr.rel (0) target = $region37
    $region36: #{_actor_forward.1} parent=1 // pred_region
      _
    $region37: #{_actor_forward.1} parent=1 // pred_fallthru
      _
    // Predicated region
    $region38: #{_actor_forward.1} parent=1 // pred_check
      _
    $region39: #{_actor_forward.1} parent=1 // pred_check_branch
      %87 = sbr.rel (0) target = $region41
    $region40: #{_actor_forward.1} parent=1 // pred_region
      %s89 = ssub.s32 16, 16
      %90 = vsyncadd [#allocation12], %s89
      %s92 = sshll.u32 [#allocation11], 4
      %s93 = int_to_ptr.vmem [resolvable:$true] %s92
      %95 = dma.hbm_to_vmem [thread:$0]  %s9, 16, %s93, [#allocation12]
    $region41: #{_actor_forward.1} parent=1 // pred_fallthru
      _
    // Predicated region
    $region42: #{_actor_forward.1} parent=1 // pred_check
      _
    $region43: #{_actor_forward.1} parent=1 // pred_check_branch
      %97 = sbr.rel (0) target = $region45
    $region44: #{_actor_forward.1} parent=1 // pred_region
      _
    $region45: #{_actor_forward.1} parent=1 // pred_fallthru
      _
    // Predicated region
    $region46: #{_actor_forward.1} parent=1 // pred_check
      _
    $region47: #{_actor_forward.1} parent=1 // pred_check_branch
      %99 = sbr.rel (0) target = $region49
    $region48: #{_actor_forward.1} parent=1 // pred_region
      _
    $region49: #{_actor_forward.1} parent=1 // pred_fallthru
      _
    // Predicated region
    $region50: #{_actor_forward.1} parent=1 // pred_check
      _
    $region51: #{_actor_forward.1} parent=1 // pred_check_branch
      %101 = sbr.rel (0) target = $region53
    $region52: #{_actor_forward.1} parent=1 // pred_region
      %102 = dma.done [#allocation4], 16
    $region53: #{_actor_forward.1} parent=1 // pred_fallthru
      _
    // Predicated region
    $region54: #{_actor_forward.1} parent=1 // pred_check
      _
    $region55: #{_actor_forward.1} parent=1 // pred_check_branch
      %104 = sbr.rel (0) target = $region57
    $region56: #{_actor_forward.1} parent=1 // pred_region
      %105 = dma.done [#allocation6], 32
    $region57: #{_actor_forward.1} parent=1 // pred_fallthru
      _
    // Predicated region
    $region58: #{_actor_forward.1} parent=1 // pred_check
      _
    $region59: #{_actor_forward.1} parent=1 // pred_check_branch
      %107 = sbr.rel (0) target = $region61
    $region60: #{_actor_forward.1} parent=1 // pred_region
      %108 = dma.done [#allocation6], 8192
    $region61: #{_actor_forward.1} parent=1 // pred_fallthru
      _
    // Predicated region
    $region62: #{_actor_forward.1} parent=1 // pred_check
      _
    $region63: #{_actor_forward.1} parent=1 // pred_check_branch
      %110 = sbr.rel (0) target = $region65
    $region64: #{_actor_forward.1} parent=1 // pred_region
      %111 = dma.done [#allocation9], 4096
    $region65: #{_actor_forward.1} parent=1 // pred_fallthru
      _
    // Predicated region
    $region66: #{_actor_forward.1} parent=1 // pred_check
      _
    $region67: #{_actor_forward.1} parent=1 // pred_check_branch
      %113 = sbr.rel (0) target = $region69
    $region68: #{_actor_forward.1} parent=1 // pred_region
      %114 = dma.done [#allocation9], 64
    $region69: #{_actor_forward.1} parent=1 // pred_fallthru
      _
    // Predicated region
    $region70: #{_actor_forward.1} parent=1 // pred_check
      _
    $region71: #{_actor_forward.1} parent=1 // pred_check_branch
      %116 = sbr.rel (0) target = $region73
    $region72: #{_actor_forward.1} parent=1 // pred_region
      %117 = dma.done [#allocation12], 16
    $region73: #{_actor_forward.1} parent=1 // pred_fallthru
      _
    %v119 = vld [vmem:[%s0] sm:$0xff]
    %v120 = vpack.c.bf16 %v119, %v119
    %v121 = vld [vmem:[%s1] sm:$0xf]
    %v122 = vld [vmem:[%s1 + $0x4] sm:$0xf]
    %v123 = vld [vmem:[%s1 + $0x8] sm:$0xf]
    %v124 = vld [vmem:[%s1 + $0xc] sm:$0xf]
    %v125 = vld [vmem:[#allocation3] sm:$0x1]
    %v127 = vlaneseq
    %v128 = vshrl.u32 %v127, 7
    %v129 = vsub.s32 0, %v128
    %v130 = vrot.slane %v125, %v129
    %v136 = vunpack.c.l.b16 %v121
    %v137 = vunpack.c.l.b16 %v122
    %v138 = vunpack.c.l.b16 %v123
    %v139 = vunpack.c.l.b16 %v124
    %v140 = vpack.c.b16 %v137, %v136
    %v141 = vpack.c.b16 %v139, %v138
    %vm144 = vcmask 261120
    %v146 = vsel %vm144, %v120, 0
    %148 = vmatprep.subr.bf16.mxu0 0
    %149 = vmatpush1.bf16.msra.mxu0 0
    %150 = vmatprep.subr.bf16.mxu0 0
    %151 = vmatpush1.bf16.msra.mxu0 0
    %152 = vmatprep.subr.bf16.mxu0 0
    %153 = vmatpush1.bf16.msra.mxu0 0
    %154 = vmatprep.subr.bf16.mxu0 0
    %155 = vmatpush1.bf16.msra.mxu0 0
    %156 = vmatprep.subr.bf16.mxu0 0
    %157 = vmatpush1.bf16.msra.mxu0 0
    %158 = vmatprep.subr.bf16.mxu0 0
    %159 = vmatpush1.bf16.msra.mxu0 0
    %160 = vmatprep.subr.bf16.mxu0 0
    %161 = vmatpush1.bf16.msra.mxu0 %v141
    %162 = vmatprep.subr.bf16.mxu0 0
    %163 = vmatpush1.bf16.msra.mxu0 %v140
    %164 = vmatprep.subr.bf16.mxu0 0
    %165 = vmatpush2.bf16.msra.mxu0 0
    %166 = vmatprep.subr.bf16.mxu0 0
    %167 = vmatpush2.bf16.msra.mxu0 0
    %168 = vmatprep.subr.bf16.mxu0 0
    %169 = vmatpush2.bf16.msra.mxu0 0
    %170 = vmatprep.subr.bf16.mxu0 0
    %171 = vmatpush2.bf16.msra.mxu0 0
    %172 = vmatprep.subr.bf16.mxu0 0
    %173 = vmatpush2.bf16.msra.mxu0 0
    %174 = vmatprep.subr.bf16.mxu0 0
    %175 = vmatpush2.bf16.msra.mxu0 0
    %176 = vmatprep.subr.bf16.mxu0 0
    %177 = vmatpush2.bf16.msra.mxu0 0
    %178 = vmatprep.subr.bf16.mxu0 0
    %179 = vmatpush2.bf16.msra.mxu0 0
    %180 = vmatprep.mubr.bf16.mxu0 0
    %181 = vmatmul.mubr.bf16.gmra.mxu0 %v146
    %v182 = vpop.f32.mrf.mxu0
    %v183 = vadd.f32 %v130, %v182
    %v184 = vpop.f32.mrf.mxu0
    %v185 = vpop.f32.mrf.mxu0
    %v186 = vpop.f32.mrf.mxu0
    %187 = vdwg.mxu0
    %vm188 = vcmp.ge.f32.partialorder %v183, 0.0
    %v189 = vmul.f32 %v183, 0.01
    %v190 = vsel %vm188, %v183, %v189
    %v191 = vpack.c.bf16 %v190, %v190
    %v192 = vld [vmem:[%s3] sm:$0xff]
    %v193 = vld [vmem:[%s3 + $0x8] sm:$0xff]
    %v194 = vld [vmem:[%s3 + $0x10] sm:$0xff]
    %v195 = vld [vmem:[%s3 + $0x18] sm:$0xff]
    %v196 = vld [vmem:[%s3 + $0x20] sm:$0xff]
    %v197 = vld [vmem:[%s3 + $0x28] sm:$0xff]
    %v198 = vld [vmem:[%s3 + $0x30] sm:$0xff]
    %v199 = vld [vmem:[%s3 + $0x38] sm:$0xff]
    %v200 = vld [vmem:[%s3 + $0x40] sm:$0xff]
    %v201 = vld [vmem:[%s3 + $0x48] sm:$0xff]
    %v202 = vld [vmem:[%s3 + $0x50] sm:$0xff]
    %v203 = vld [vmem:[%s3 + $0x58] sm:$0xff]
    %v204 = vld [vmem:[%s3 + $0x60] sm:$0xff]
    %v205 = vld [vmem:[%s3 + $0x68] sm:$0xff]
    %v206 = vld [vmem:[%s3 + $0x70] sm:$0xff]
    %v207 = vld [vmem:[%s3 + $0x78] sm:$0xff]
    %v208 = vld [vmem:[#allocation5] sm:$0x3]
    %v210 = vlaneseq
    %v211 = vshrl.u32 %v210, 7
    %v212 = vsub.s32 0, %v211
    %v213 = vrot.slane %v208, %v212
    %v214 = vlaneseq
    %v215 = vshrl.u32 %v214, 7
    %v216 = vsub.s32 1, %v215
    %v217 = vrot.slane %v208, %v216
    %v236 = vunpack.c.l.b16 %v192
    %v237 = vunpack.c.h.b16 %v192
    %v238 = vunpack.c.l.b16 %v193
    %v239 = vunpack.c.h.b16 %v193
    %v240 = vunpack.c.l.b16 %v194
    %v241 = vunpack.c.h.b16 %v194
    %v242 = vunpack.c.l.b16 %v195
    %v243 = vunpack.c.h.b16 %v195
    %v244 = vunpack.c.l.b16 %v196
    %v245 = vunpack.c.h.b16 %v196
    %v246 = vunpack.c.l.b16 %v197
    %v247 = vunpack.c.h.b16 %v197
    %v248 = vunpack.c.l.b16 %v198
    %v249 = vunpack.c.h.b16 %v198
    %v250 = vunpack.c.l.b16 %v199
    %v251 = vunpack.c.h.b16 %v199
    %v252 = vunpack.c.l.b16 %v200
    %v253 = vunpack.c.h.b16 %v200
    %v254 = vunpack.c.l.b16 %v201
    %v255 = vunpack.c.h.b16 %v201
    %v256 = vunpack.c.l.b16 %v202
    %v257 = vunpack.c.h.b16 %v202
    %v258 = vunpack.c.l.b16 %v203
    %v259 = vunpack.c.h.b16 %v203
    %v260 = vunpack.c.l.b16 %v204
    %v261 = vunpack.c.h.b16 %v204
    %v262 = vunpack.c.l.b16 %v205
    %v263 = vunpack.c.h.b16 %v205
    %v264 = vunpack.c.l.b16 %v206
    %v265 = vunpack.c.h.b16 %v206
    %v266 = vunpack.c.l.b16 %v207
    %v267 = vunpack.c.h.b16 %v207
    %v268 = vpack.c.b16 %v238, %v236
    %v269 = vpack.c.b16 %v239, %v237
    %v270 = vpack.c.b16 %v242, %v240
    %v271 = vpack.c.b16 %v243, %v241
    %v272 = vpack.c.b16 %v246, %v244
    %v273 = vpack.c.b16 %v247, %v245
    %v274 = vpack.c.b16 %v250, %v248
    %v275 = vpack.c.b16 %v251, %v249
    %v276 = vpack.c.b16 %v254, %v252
    %v277 = vpack.c.b16 %v255, %v253
    %v278 = vpack.c.b16 %v258, %v256
    %v279 = vpack.c.b16 %v259, %v257
    %v280 = vpack.c.b16 %v262, %v260
    %v281 = vpack.c.b16 %v263, %v261
    %v282 = vpack.c.b16 %v266, %v264
    %v283 = vpack.c.b16 %v267, %v265
    %300 = vmatprep.subr.bf16.mxu0 %v283
    %301 = vmatpush1.bf16.msra.mxu0 %v282
    %302 = vmatprep.subr.bf16.mxu0 %v281
    %303 = vmatpush1.bf16.msra.mxu0 %v280
    %304 = vmatprep.subr.bf16.mxu0 %v279
    %305 = vmatpush1.bf16.msra.mxu0 %v278
    %306 = vmatprep.subr.bf16.mxu0 %v277
    %307 = vmatpush1.bf16.msra.mxu0 %v276
    %308 = vmatprep.subr.bf16.mxu0 %v275
    %309 = vmatpush1.bf16.msra.mxu0 %v274
    %310 = vmatprep.subr.bf16.mxu0 %v273
    %311 = vmatpush1.bf16.msra.mxu0 %v272
    %312 = vmatprep.subr.bf16.mxu0 %v271
    %313 = vmatpush1.bf16.msra.mxu0 %v270
    %314 = vmatprep.subr.bf16.mxu0 %v269
    %315 = vmatpush1.bf16.msra.mxu0 %v268
    %316 = vmatprep.subr.bf16.mxu0 0
    %317 = vmatpush2.bf16.msra.mxu0 0
    %318 = vmatprep.subr.bf16.mxu0 0
    %319 = vmatpush2.bf16.msra.mxu0 0
    %320 = vmatprep.subr.bf16.mxu0 0
    %321 = vmatpush2.bf16.msra.mxu0 0
    %322 = vmatprep.subr.bf16.mxu0 0
    %323 = vmatpush2.bf16.msra.mxu0 0
    %324 = vmatprep.subr.bf16.mxu0 0
    %325 = vmatpush2.bf16.msra.mxu0 0
    %326 = vmatprep.subr.bf16.mxu0 0
    %327 = vmatpush2.bf16.msra.mxu0 0
    %328 = vmatprep.subr.bf16.mxu0 0
    %329 = vmatpush2.bf16.msra.mxu0 0
    %330 = vmatprep.subr.bf16.mxu0 0
    %331 = vmatpush2.bf16.msra.mxu0 0
    %332 = vmatprep.mubr.bf16.mxu0 0
    %333 = vmatmul.mubr.bf16.gmra.mxu0 %v191
    %v334 = vpop.f32.mrf.mxu0
    %v335 = vadd.f32 %v213, %v334
    %v336 = vpop.f32.mrf.mxu0
    %v337 = vadd.f32 %v217, %v336
    %v338 = vpop.f32.mrf.mxu0
    %v339 = vpop.f32.mrf.mxu0
    %340 = vdwg.mxu0
    %vm341 = vcmp.ge.f32.partialorder %v335, 0.0
    %vm342 = vcmp.ge.f32.partialorder %v337, 0.0
    %v343 = vmul.f32 %v335, 0.01
    %v344 = vmul.f32 %v337, 0.01
    %v345 = vsel %vm341, %v335, %v343
    %v346 = vsel %vm342, %v337, %v344
    %v347 = vpack.c.bf16 %v345, %v345
    %v348 = vpack.c.bf16 %v346, %v346
    %v349 = vld [vmem:[#allocation7] sm:$0xff]
    %v350 = vld [vmem:[#allocation7 + $0x8] sm:$0xff]
    %v351 = vld [vmem:[#allocation7 + $0x10] sm:$0xff]
    %v352 = vld [vmem:[#allocation7 + $0x18] sm:$0xff]
    %v353 = vld [vmem:[#allocation7 + $0x20] sm:$0xff]
    %v354 = vld [vmem:[#allocation7 + $0x28] sm:$0xff]
    %v355 = vld [vmem:[#allocation7 + $0x30] sm:$0xff]
    %v356 = vld [vmem:[#allocation7 + $0x38] sm:$0xff]
    %v357 = vld [vmem:[#allocation7 + $0x40] sm:$0xff]
    %v358 = vld [vmem:[#allocation7 + $0x48] sm:$0xff]
    %v359 = vld [vmem:[#allocation7 + $0x50] sm:$0xff]
    %v360 = vld [vmem:[#allocation7 + $0x58] sm:$0xff]
    %v361 = vld [vmem:[#allocation7 + $0x60] sm:$0xff]
    %v362 = vld [vmem:[#allocation7 + $0x68] sm:$0xff]
    %v363 = vld [vmem:[#allocation7 + $0x70] sm:$0xff]
    %v364 = vld [vmem:[#allocation7 + $0x78] sm:$0xff]
    %v365 = vld [vmem:[#allocation7 + $0x80] sm:$0xff]
    %v366 = vld [vmem:[#allocation7 + $0x88] sm:$0xff]
    %v367 = vld [vmem:[#allocation7 + $0x90] sm:$0xff]
    %v368 = vld [vmem:[#allocation7 + $0x98] sm:$0xff]
    %v369 = vld [vmem:[#allocation7 + $0xa0] sm:$0xff]
    %v370 = vld [vmem:[#allocation7 + $0xa8] sm:$0xff]
    %v371 = vld [vmem:[#allocation7 + $0xb0] sm:$0xff]
    %v372 = vld [vmem:[#allocation7 + $0xb8] sm:$0xff]
    %v373 = vld [vmem:[#allocation7 + $0xc0] sm:$0xff]
    %v374 = vld [vmem:[#allocation7 + $0xc8] sm:$0xff]
    %v375 = vld [vmem:[#allocation7 + $0xd0] sm:$0xff]
    %v376 = vld [vmem:[#allocation7 + $0xd8] sm:$0xff]
    %v377 = vld [vmem:[#allocation7 + $0xe0] sm:$0xff]
    %v378 = vld [vmem:[#allocation7 + $0xe8] sm:$0xff]
    %v379 = vld [vmem:[#allocation7 + $0xf0] sm:$0xff]
    %v380 = vld [vmem:[#allocation7 + $0xf8] sm:$0xff]
    %v381 = vld [vmem:[#allocation7 + $0x100] sm:$0xff]
    %v382 = vld [vmem:[#allocation7 + $0x108] sm:$0xff]
    %v383 = vld [vmem:[#allocation7 + $0x110] sm:$0xff]
    %v384 = vld [vmem:[#allocation7 + $0x118] sm:$0xff]
    %v385 = vld [vmem:[#allocation7 + $0x120] sm:$0xff]
    %v386 = vld [vmem:[#allocation7 + $0x128] sm:$0xff]
    %v387 = vld [vmem:[#allocation7 + $0x130] sm:$0xff]
    %v388 = vld [vmem:[#allocation7 + $0x138] sm:$0xff]
    %v389 = vld [vmem:[#allocation7 + $0x140] sm:$0xff]
    %v390 = vld [vmem:[#allocation7 + $0x148] sm:$0xff]
    %v391 = vld [vmem:[#allocation7 + $0x150] sm:$0xff]
    %v392 = vld [vmem:[#allocation7 + $0x158] sm:$0xff]
    %v393 = vld [vmem:[#allocation7 + $0x160] sm:$0xff]
    %v394 = vld [vmem:[#allocation7 + $0x168] sm:$0xff]
    %v395 = vld [vmem:[#allocation7 + $0x170] sm:$0xff]
    %v396 = vld [vmem:[#allocation7 + $0x178] sm:$0xff]
    %v397 = vld [vmem:[#allocation7 + $0x180] sm:$0xff]
    %v398 = vld [vmem:[#allocation7 + $0x188] sm:$0xff]
    %v399 = vld [vmem:[#allocation7 + $0x190] sm:$0xff]
    %v400 = vld [vmem:[#allocation7 + $0x198] sm:$0xff]
    %v401 = vld [vmem:[#allocation7 + $0x1a0] sm:$0xff]
    %v402 = vld [vmem:[#allocation7 + $0x1a8] sm:$0xff]
    %v403 = vld [vmem:[#allocation7 + $0x1b0] sm:$0xff]
    %v404 = vld [vmem:[#allocation7 + $0x1b8] sm:$0xff]
    %v405 = vld [vmem:[#allocation7 + $0x1c0] sm:$0xff]
    %v406 = vld [vmem:[#allocation7 + $0x1c8] sm:$0xff]
    %v407 = vld [vmem:[#allocation7 + $0x1d0] sm:$0xff]
    %v408 = vld [vmem:[#allocation7 + $0x1d8] sm:$0xff]
    %v409 = vld [vmem:[#allocation7 + $0x1e0] sm:$0xff]
    %v410 = vld [vmem:[#allocation7 + $0x1e8] sm:$0xff]
    %v411 = vld [vmem:[#allocation7 + $0x1f0] sm:$0xff]
    %v412 = vld [vmem:[#allocation7 + $0x1f8] sm:$0xff]
    %v413 = vld [vmem:[#allocation10] sm:$0xf]
    %v415 = vlaneseq
    %v416 = vshrl.u32 %v415, 7
    %v417 = vsub.s32 0, %v416
    %v418 = vrot.slane %v413, %v417
    %v419 = vlaneseq
    %v420 = vshrl.u32 %v419, 7
    %v421 = vsub.s32 1, %v420
    %v422 = vrot.slane %v413, %v421
    %v423 = vlaneseq
    %v424 = vshrl.u32 %v423, 7
    %v425 = vsub.s32 2, %v424
    %v426 = vrot.slane %v413, %v425
    %v427 = vlaneseq
    %v428 = vshrl.u32 %v427, 7
    %v429 = vsub.s32 3, %v428
    %v430 = vrot.slane %v413, %v429
    %v499 = vunpack.c.l.b16 %v349
    %v500 = vunpack.c.h.b16 %v349
    %v501 = vunpack.c.l.b16 %v350
    %v502 = vunpack.c.h.b16 %v350
    %v503 = vunpack.c.l.b16 %v351
    %v504 = vunpack.c.h.b16 %v351
    %v505 = vunpack.c.l.b16 %v352
    %v506 = vunpack.c.h.b16 %v352
    %v507 = vunpack.c.l.b16 %v353
    %v508 = vunpack.c.h.b16 %v353
    %v509 = vunpack.c.l.b16 %v354
    %v510 = vunpack.c.h.b16 %v354
    %v511 = vunpack.c.l.b16 %v355
    %v512 = vunpack.c.h.b16 %v355
    %v513 = vunpack.c.l.b16 %v356
    %v514 = vunpack.c.h.b16 %v356
    %v515 = vunpack.c.l.b16 %v357
    %v516 = vunpack.c.h.b16 %v357
    %v517 = vunpack.c.l.b16 %v358
    %v518 = vunpack.c.h.b16 %v358
    %v519 = vunpack.c.l.b16 %v359
    %v520 = vunpack.c.h.b16 %v359
    %v521 = vunpack.c.l.b16 %v360
    %v522 = vunpack.c.h.b16 %v360
    %v523 = vunpack.c.l.b16 %v361
    %v524 = vunpack.c.h.b16 %v361
    %v525 = vunpack.c.l.b16 %v362
    %v526 = vunpack.c.h.b16 %v362
    %v527 = vunpack.c.l.b16 %v363
    %v528 = vunpack.c.h.b16 %v363
    %v529 = vunpack.c.l.b16 %v364
    %v530 = vunpack.c.h.b16 %v364
    %v531 = vunpack.c.l.b16 %v365
    %v532 = vunpack.c.h.b16 %v365
    %v533 = vunpack.c.l.b16 %v366
    %v534 = vunpack.c.h.b16 %v366
    %v535 = vunpack.c.l.b16 %v367
    %v536 = vunpack.c.h.b16 %v367
    %v537 = vunpack.c.l.b16 %v368
    %v538 = vunpack.c.h.b16 %v368
    %v539 = vunpack.c.l.b16 %v369
    %v540 = vunpack.c.h.b16 %v369
    %v541 = vunpack.c.l.b16 %v370
    %v542 = vunpack.c.h.b16 %v370
    %v543 = vunpack.c.l.b16 %v371
    %v544 = vunpack.c.h.b16 %v371
    %v545 = vunpack.c.l.b16 %v372
    %v546 = vunpack.c.h.b16 %v372
    %v547 = vunpack.c.l.b16 %v373
    %v548 = vunpack.c.h.b16 %v373
    %v549 = vunpack.c.l.b16 %v374
    %v550 = vunpack.c.h.b16 %v374
    %v551 = vunpack.c.l.b16 %v375
    %v552 = vunpack.c.h.b16 %v375
    %v553 = vunpack.c.l.b16 %v376
    %v554 = vunpack.c.h.b16 %v376
    %v555 = vunpack.c.l.b16 %v377
    %v556 = vunpack.c.h.b16 %v377
    %v557 = vunpack.c.l.b16 %v378
    %v558 = vunpack.c.h.b16 %v378
    %v559 = vunpack.c.l.b16 %v379
    %v560 = vunpack.c.h.b16 %v379
    %v561 = vunpack.c.l.b16 %v380
    %v562 = vunpack.c.h.b16 %v380
    %v563 = vunpack.c.l.b16 %v381
    %v564 = vunpack.c.h.b16 %v381
    %v565 = vunpack.c.l.b16 %v382
    %v566 = vunpack.c.h.b16 %v382
    %v567 = vunpack.c.l.b16 %v383
    %v568 = vunpack.c.h.b16 %v383
    %v569 = vunpack.c.l.b16 %v384
    %v570 = vunpack.c.h.b16 %v384
    %v571 = vunpack.c.l.b16 %v385
    %v572 = vunpack.c.h.b16 %v385
    %v573 = vunpack.c.l.b16 %v386
    %v574 = vunpack.c.h.b16 %v386
    %v575 = vunpack.c.l.b16 %v387
    %v576 = vunpack.c.h.b16 %v387
    %v577 = vunpack.c.l.b16 %v388
    %v578 = vunpack.c.h.b16 %v388
    %v579 = vunpack.c.l.b16 %v389
    %v580 = vunpack.c.h.b16 %v389
    %v581 = vunpack.c.l.b16 %v390
    %v582 = vunpack.c.h.b16 %v390
    %v583 = vunpack.c.l.b16 %v391
    %v584 = vunpack.c.h.b16 %v391
    %v585 = vunpack.c.l.b16 %v392
    %v586 = vunpack.c.h.b16 %v392
    %v587 = vunpack.c.l.b16 %v393
    %v588 = vunpack.c.h.b16 %v393
    %v589 = vunpack.c.l.b16 %v394
    %v590 = vunpack.c.h.b16 %v394
    %v591 = vunpack.c.l.b16 %v395
    %v592 = vunpack.c.h.b16 %v395
    %v593 = vunpack.c.l.b16 %v396
    %v594 = vunpack.c.h.b16 %v396
    %v595 = vunpack.c.l.b16 %v397
    %v596 = vunpack.c.h.b16 %v397
    %v597 = vunpack.c.l.b16 %v398
    %v598 = vunpack.c.h.b16 %v398
    %v599 = vunpack.c.l.b16 %v399
    %v600 = vunpack.c.h.b16 %v399
    %v601 = vunpack.c.l.b16 %v400
    %v602 = vunpack.c.h.b16 %v400
    %v603 = vunpack.c.l.b16 %v401
    %v604 = vunpack.c.h.b16 %v401
    %v605 = vunpack.c.l.b16 %v402
    %v606 = vunpack.c.h.b16 %v402
    %v607 = vunpack.c.l.b16 %v403
    %v608 = vunpack.c.h.b16 %v403
    %v609 = vunpack.c.l.b16 %v404
    %v610 = vunpack.c.h.b16 %v404
    %v611 = vunpack.c.l.b16 %v405
    %v612 = vunpack.c.h.b16 %v405
    %v613 = vunpack.c.l.b16 %v406
    %v614 = vunpack.c.h.b16 %v406
    %v615 = vunpack.c.l.b16 %v407
    %v616 = vunpack.c.h.b16 %v407
    %v617 = vunpack.c.l.b16 %v408
    %v618 = vunpack.c.h.b16 %v408
    %v619 = vunpack.c.l.b16 %v409
    %v620 = vunpack.c.h.b16 %v409
    %v621 = vunpack.c.l.b16 %v410
    %v622 = vunpack.c.h.b16 %v410
    %v623 = vunpack.c.l.b16 %v411
    %v624 = vunpack.c.h.b16 %v411
    %v625 = vunpack.c.l.b16 %v412
    %v626 = vunpack.c.h.b16 %v412
    %v627 = vpack.c.b16 %v503, %v499
    %v628 = vpack.c.b16 %v504, %v500
    %v629 = vpack.c.b16 %v505, %v501
    %v630 = vpack.c.b16 %v506, %v502
    %v631 = vpack.c.b16 %v511, %v507
    %v632 = vpack.c.b16 %v512, %v508
    %v633 = vpack.c.b16 %v513, %v509
    %v634 = vpack.c.b16 %v514, %v510
    %v635 = vpack.c.b16 %v519, %v515
    %v636 = vpack.c.b16 %v520, %v516
    %v637 = vpack.c.b16 %v521, %v517
    %v638 = vpack.c.b16 %v522, %v518
    %v639 = vpack.c.b16 %v527, %v523
    %v640 = vpack.c.b16 %v528, %v524
    %v641 = vpack.c.b16 %v529, %v525
    %v642 = vpack.c.b16 %v530, %v526
    %v643 = vpack.c.b16 %v535, %v531
    %v644 = vpack.c.b16 %v536, %v532
    %v645 = vpack.c.b16 %v537, %v533
    %v646 = vpack.c.b16 %v538, %v534
    %v647 = vpack.c.b16 %v543, %v539
    %v648 = vpack.c.b16 %v544, %v540
    %v649 = vpack.c.b16 %v545, %v541
    %v650 = vpack.c.b16 %v546, %v542
    %v651 = vpack.c.b16 %v551, %v547
    %v652 = vpack.c.b16 %v552, %v548
    %v653 = vpack.c.b16 %v553, %v549
    %v654 = vpack.c.b16 %v554, %v550
    %v655 = vpack.c.b16 %v559, %v555
    %v656 = vpack.c.b16 %v560, %v556
    %v657 = vpack.c.b16 %v561, %v557
    %v658 = vpack.c.b16 %v562, %v558
    %v659 = vpack.c.b16 %v567, %v563
    %v660 = vpack.c.b16 %v568, %v564
    %v661 = vpack.c.b16 %v569, %v565
    %v662 = vpack.c.b16 %v570, %v566
    %v663 = vpack.c.b16 %v575, %v571
    %v664 = vpack.c.b16 %v576, %v572
    %v665 = vpack.c.b16 %v577, %v573
    %v666 = vpack.c.b16 %v578, %v574
    %v667 = vpack.c.b16 %v583, %v579
    %v668 = vpack.c.b16 %v584, %v580
    %v669 = vpack.c.b16 %v585, %v581
    %v670 = vpack.c.b16 %v586, %v582
    %v671 = vpack.c.b16 %v591, %v587
    %v672 = vpack.c.b16 %v592, %v588
    %v673 = vpack.c.b16 %v593, %v589
    %v674 = vpack.c.b16 %v594, %v590
    %v675 = vpack.c.b16 %v599, %v595
    %v676 = vpack.c.b16 %v600, %v596
    %v677 = vpack.c.b16 %v601, %v597
    %v678 = vpack.c.b16 %v602, %v598
    %v679 = vpack.c.b16 %v607, %v603
    %v680 = vpack.c.b16 %v608, %v604
    %v681 = vpack.c.b16 %v609, %v605
    %v682 = vpack.c.b16 %v610, %v606
    %v683 = vpack.c.b16 %v615, %v611
    %v684 = vpack.c.b16 %v616, %v612
    %v685 = vpack.c.b16 %v617, %v613
    %v686 = vpack.c.b16 %v618, %v614
    %v687 = vpack.c.b16 %v623, %v619
    %v688 = vpack.c.b16 %v624, %v620
    %v689 = vpack.c.b16 %v625, %v621
    %v690 = vpack.c.b16 %v626, %v622
    %755 = vmatprep.subr.bf16.mxu0 %v656
    %756 = vmatpush1.bf16.msra.mxu0 %v655
    %757 = vmatprep.subr.bf16.mxu0 %v652
    %758 = vmatpush1.bf16.msra.mxu0 %v651
    %759 = vmatprep.subr.bf16.mxu0 %v648
    %760 = vmatpush1.bf16.msra.mxu0 %v647
    %761 = vmatprep.subr.bf16.mxu0 %v644
    %762 = vmatpush1.bf16.msra.mxu0 %v643
    %763 = vmatprep.subr.bf16.mxu0 %v640
    %764 = vmatpush1.bf16.msra.mxu0 %v639
    %765 = vmatprep.subr.bf16.mxu0 %v636
    %766 = vmatpush1.bf16.msra.mxu0 %v635
    %767 = vmatprep.subr.bf16.mxu0 %v632
    %768 = vmatpush1.bf16.msra.mxu0 %v631
    %769 = vmatprep.subr.bf16.mxu0 %v628
    %770 = vmatpush1.bf16.msra.mxu0 %v627
    %771 = vmatprep.subr.bf16.mxu0 %v688
    %772 = vmatpush2.bf16.msra.mxu0 %v687
    %773 = vmatprep.subr.bf16.mxu0 %v684
    %774 = vmatpush2.bf16.msra.mxu0 %v683
    %775 = vmatprep.subr.bf16.mxu0 %v680
    %776 = vmatpush2.bf16.msra.mxu0 %v679
    %777 = vmatprep.subr.bf16.mxu0 %v676
    %778 = vmatpush2.bf16.msra.mxu0 %v675
    %779 = vmatprep.subr.bf16.mxu0 %v672
    %780 = vmatpush2.bf16.msra.mxu0 %v671
    %781 = vmatprep.subr.bf16.mxu0 %v668
    %782 = vmatpush2.bf16.msra.mxu0 %v667
    %783 = vmatprep.subr.bf16.mxu0 %v664
    %784 = vmatpush2.bf16.msra.mxu0 %v663
    %785 = vmatprep.subr.bf16.mxu0 %v660
    %786 = vmatpush2.bf16.msra.mxu0 %v659
    %787 = vmatprep.mubr.bf16.mxu0 %v348
    %788 = vmatmul.mubr.bf16.gmra.mxu0 %v347
    %v789 = vpop.f32.mrf.mxu0
    %v790 = vadd.f32 %v418, %v789
    %v791 = vpop.f32.mrf.mxu0
    %v792 = vadd.f32 %v422, %v791
    %v793 = vpop.f32.mrf.mxu0
    %v794 = vpop.f32.mrf.mxu0
    %795 = vdwg.mxu0
    %796 = vmatprep.subr.bf16.mxu0 %v658
    %797 = vmatpush1.bf16.msra.mxu0 %v657
    %798 = vmatprep.subr.bf16.mxu0 %v654
    %799 = vmatpush1.bf16.msra.mxu0 %v653
    %800 = vmatprep.subr.bf16.mxu0 %v650
    %801 = vmatpush1.bf16.msra.mxu0 %v649
    %802 = vmatprep.subr.bf16.mxu0 %v646
    %803 = vmatpush1.bf16.msra.mxu0 %v645
    %804 = vmatprep.subr.bf16.mxu0 %v642
    %805 = vmatpush1.bf16.msra.mxu0 %v641
    %806 = vmatprep.subr.bf16.mxu0 %v638
    %807 = vmatpush1.bf16.msra.mxu0 %v637
    %808 = vmatprep.subr.bf16.mxu0 %v634
    %809 = vmatpush1.bf16.msra.mxu0 %v633
    %810 = vmatprep.subr.bf16.mxu0 %v630
    %811 = vmatpush1.bf16.msra.mxu0 %v629
    %812 = vmatprep.subr.bf16.mxu0 %v690
    %813 = vmatpush2.bf16.msra.mxu0 %v689
    %814 = vmatprep.subr.bf16.mxu0 %v686
    %815 = vmatpush2.bf16.msra.mxu0 %v685
    %816 = vmatprep.subr.bf16.mxu0 %v682
    %817 = vmatpush2.bf16.msra.mxu0 %v681
    %818 = vmatprep.subr.bf16.mxu0 %v678
    %819 = vmatpush2.bf16.msra.mxu0 %v677
    %820 = vmatprep.subr.bf16.mxu0 %v674
    %821 = vmatpush2.bf16.msra.mxu0 %v673
    %822 = vmatprep.subr.bf16.mxu0 %v670
    %823 = vmatpush2.bf16.msra.mxu0 %v669
    %824 = vmatprep.subr.bf16.mxu0 %v666
    %825 = vmatpush2.bf16.msra.mxu0 %v665
    %826 = vmatprep.subr.bf16.mxu0 %v662
    %827 = vmatpush2.bf16.msra.mxu0 %v661
    %828 = vmatprep.mubr.bf16.mxu0 %v348
    %829 = vmatmul.mubr.bf16.gmra.mxu0 %v347
    %v830 = vpop.f32.mrf.mxu0
    %v831 = vadd.f32 %v426, %v830
    %v832 = vpop.f32.mrf.mxu0
    %v833 = vadd.f32 %v430, %v832
    %v834 = vpop.f32.mrf.mxu0
    %v835 = vpop.f32.mrf.mxu0
    %836 = vdwg.mxu0
    %v837 = vld [vmem:[#allocation8] sm:$0xff]
    %v838 = vld [vmem:[#allocation8 + $0x8] sm:$0xff]
    %v839 = vld [vmem:[#allocation8 + $0x10] sm:$0xff]
    %v840 = vld [vmem:[#allocation8 + $0x18] sm:$0xff]
    %v841 = vld [vmem:[#allocation8 + $0x20] sm:$0xff]
    %v842 = vld [vmem:[#allocation8 + $0x28] sm:$0xff]
    %v843 = vld [vmem:[#allocation8 + $0x30] sm:$0xff]
    %v844 = vld [vmem:[#allocation8 + $0x38] sm:$0xff]
    %v845 = vld [vmem:[#allocation8 + $0x40] sm:$0xff]
    %v846 = vld [vmem:[#allocation8 + $0x48] sm:$0xff]
    %v847 = vld [vmem:[#allocation8 + $0x50] sm:$0xff]
    %v848 = vld [vmem:[#allocation8 + $0x58] sm:$0xff]
    %v849 = vld [vmem:[#allocation8 + $0x60] sm:$0xff]
    %v850 = vld [vmem:[#allocation8 + $0x68] sm:$0xff]
    %v851 = vld [vmem:[#allocation8 + $0x70] sm:$0xff]
    %v852 = vld [vmem:[#allocation8 + $0x78] sm:$0xff]
    %v853 = vld [vmem:[#allocation8 + $0x80] sm:$0xff]
    %v854 = vld [vmem:[#allocation8 + $0x88] sm:$0xff]
    %v855 = vld [vmem:[#allocation8 + $0x90] sm:$0xff]
    %v856 = vld [vmem:[#allocation8 + $0x98] sm:$0xff]
    %v857 = vld [vmem:[#allocation8 + $0xa0] sm:$0xff]
    %v858 = vld [vmem:[#allocation8 + $0xa8] sm:$0xff]
    %v859 = vld [vmem:[#allocation8 + $0xb0] sm:$0xff]
    %v860 = vld [vmem:[#allocation8 + $0xb8] sm:$0xff]
    %v861 = vld [vmem:[#allocation8 + $0xc0] sm:$0xff]
    %v862 = vld [vmem:[#allocation8 + $0xc8] sm:$0xff]
    %v863 = vld [vmem:[#allocation8 + $0xd0] sm:$0xff]
    %v864 = vld [vmem:[#allocation8 + $0xd8] sm:$0xff]
    %v865 = vld [vmem:[#allocation8 + $0xe0] sm:$0xff]
    %v866 = vld [vmem:[#allocation8 + $0xe8] sm:$0xff]
    %v867 = vld [vmem:[#allocation8 + $0xf0] sm:$0xff]
    %v868 = vld [vmem:[#allocation8 + $0xf8] sm:$0xff]
    %v869 = vld [vmem:[%s10] sm:$0x1]
    %v870 = vld [vmem:[%s11] sm:$0x1]
    %v871 = vpack.c.bf16 %v869, %v869
    %v904 = vunpack.c.l.b16 %v837
    %v905 = vunpack.c.h.b16 %v837
    %v906 = vunpack.c.l.b16 %v838
    %v907 = vunpack.c.h.b16 %v838
    %v908 = vunpack.c.l.b16 %v839
    %v909 = vunpack.c.h.b16 %v839
    %v910 = vunpack.c.l.b16 %v840
    %v911 = vunpack.c.h.b16 %v840
    %v912 = vunpack.c.l.b16 %v841
    %v913 = vunpack.c.h.b16 %v841
    %v914 = vunpack.c.l.b16 %v842
    %v915 = vunpack.c.h.b16 %v842
    %v916 = vunpack.c.l.b16 %v843
    %v917 = vunpack.c.h.b16 %v843
    %v918 = vunpack.c.l.b16 %v844
    %v919 = vunpack.c.h.b16 %v844
    %v920 = vunpack.c.l.b16 %v845
    %v921 = vunpack.c.h.b16 %v845
    %v922 = vunpack.c.l.b16 %v846
    %v923 = vunpack.c.h.b16 %v846
    %v924 = vunpack.c.l.b16 %v847
    %v925 = vunpack.c.h.b16 %v847
    %v926 = vunpack.c.l.b16 %v848
    %v927 = vunpack.c.h.b16 %v848
    %v928 = vunpack.c.l.b16 %v849
    %v929 = vunpack.c.h.b16 %v849
    %v930 = vunpack.c.l.b16 %v850
    %v931 = vunpack.c.h.b16 %v850
    %v932 = vunpack.c.l.b16 %v851
    %v933 = vunpack.c.h.b16 %v851
    %v934 = vunpack.c.l.b16 %v852
    %v935 = vunpack.c.h.b16 %v852
    %v936 = vunpack.c.l.b16 %v853
    %v937 = vunpack.c.h.b16 %v853
    %v938 = vunpack.c.l.b16 %v854
    %v939 = vunpack.c.h.b16 %v854
    %v940 = vunpack.c.l.b16 %v855
    %v941 = vunpack.c.h.b16 %v855
    %v942 = vunpack.c.l.b16 %v856
    %v943 = vunpack.c.h.b16 %v856
    %v944 = vunpack.c.l.b16 %v857
    %v945 = vunpack.c.h.b16 %v857
    %v946 = vunpack.c.l.b16 %v858
    %v947 = vunpack.c.h.b16 %v858
    %v948 = vunpack.c.l.b16 %v859
    %v949 = vunpack.c.h.b16 %v859
    %v950 = vunpack.c.l.b16 %v860
    %v951 = vunpack.c.h.b16 %v860
    %v952 = vunpack.c.l.b16 %v861
    %v953 = vunpack.c.h.b16 %v861
    %v954 = vunpack.c.l.b16 %v862
    %v955 = vunpack.c.h.b16 %v862
    %v956 = vunpack.c.l.b16 %v863
    %v957 = vunpack.c.h.b16 %v863
    %v958 = vunpack.c.l.b16 %v864
    %v959 = vunpack.c.h.b16 %v864
    %v960 = vunpack.c.l.b16 %v865
    %v961 = vunpack.c.h.b16 %v865
    %v962 = vunpack.c.l.b16 %v866
    %v963 = vunpack.c.h.b16 %v866
    %v964 = vunpack.c.l.b16 %v867
    %v965 = vunpack.c.h.b16 %v867
    %v966 = vunpack.c.l.b16 %v868
    %v967 = vunpack.c.h.b16 %v868
    %v968 = vpack.c.b16 %v908, %v904
    %v969 = vpack.c.b16 %v909, %v905
    %v970 = vpack.c.b16 %v910, %v906
    %v971 = vpack.c.b16 %v911, %v907
    %v972 = vpack.c.b16 %v916, %v912
    %v973 = vpack.c.b16 %v917, %v913
    %v974 = vpack.c.b16 %v918, %v914
    %v975 = vpack.c.b16 %v919, %v915
    %v976 = vpack.c.b16 %v924, %v920
    %v977 = vpack.c.b16 %v925, %v921
    %v978 = vpack.c.b16 %v926, %v922
    %v979 = vpack.c.b16 %v927, %v923
    %v980 = vpack.c.b16 %v932, %v928
    %v981 = vpack.c.b16 %v933, %v929
    %v982 = vpack.c.b16 %v934, %v930
    %v983 = vpack.c.b16 %v935, %v931
    %v984 = vpack.c.b16 %v940, %v936
    %v985 = vpack.c.b16 %v941, %v937
    %v986 = vpack.c.b16 %v942, %v938
    %v987 = vpack.c.b16 %v943, %v939
    %v988 = vpack.c.b16 %v948, %v944
    %v989 = vpack.c.b16 %v949, %v945
    %v990 = vpack.c.b16 %v950, %v946
    %v991 = vpack.c.b16 %v951, %v947
    %v992 = vpack.c.b16 %v956, %v952
    %v993 = vpack.c.b16 %v957, %v953
    %v994 = vpack.c.b16 %v958, %v954
    %v995 = vpack.c.b16 %v959, %v955
    %v996 = vpack.c.b16 %v964, %v960
    %v997 = vpack.c.b16 %v965, %v961
    %v998 = vpack.c.b16 %v966, %v962
    %v999 = vpack.c.b16 %v967, %v963
    %1032 = vmatprep.subr.bf16.mxu0 %v997
    %1033 = vmatpush1.bf16.msra.mxu0 %v996
    %1034 = vmatprep.subr.bf16.mxu0 %v993
    %1035 = vmatpush1.bf16.msra.mxu0 %v992
    %1036 = vmatprep.subr.bf16.mxu0 %v989
    %1037 = vmatpush1.bf16.msra.mxu0 %v988
    %1038 = vmatprep.subr.bf16.mxu0 %v985
    %1039 = vmatpush1.bf16.msra.mxu0 %v984
    %1040 = vmatprep.subr.bf16.mxu0 %v981
    %1041 = vmatpush1.bf16.msra.mxu0 %v980
    %1042 = vmatprep.subr.bf16.mxu0 %v977
    %1043 = vmatpush1.bf16.msra.mxu0 %v976
    %1044 = vmatprep.subr.bf16.mxu0 %v973
    %1045 = vmatpush1.bf16.msra.mxu0 %v972
    %1046 = vmatprep.subr.bf16.mxu0 %v969
    %1047 = vmatpush1.bf16.msra.mxu0 %v968
    %1048 = vmatprep.subr.bf16.mxu0 0
    %1049 = vmatpush2.bf16.msra.mxu0 0
    %1050 = vmatprep.subr.bf16.mxu0 0
    %1051 = vmatpush2.bf16.msra.mxu0 0
    %1052 = vmatprep.subr.bf16.mxu0 0
    %1053 = vmatpush2.bf16.msra.mxu0 0
    %1054 = vmatprep.subr.bf16.mxu0 0
    %1055 = vmatpush2.bf16.msra.mxu0 0
    %1056 = vmatprep.subr.bf16.mxu0 0
    %1057 = vmatpush2.bf16.msra.mxu0 0
    %1058 = vmatprep.subr.bf16.mxu0 0
    %1059 = vmatpush2.bf16.msra.mxu0 0
    %1060 = vmatprep.subr.bf16.mxu0 0
    %1061 = vmatpush2.bf16.msra.mxu0 0
    %1062 = vmatprep.subr.bf16.mxu0 0
    %1063 = vmatpush2.bf16.msra.mxu0 0
    %1064 = vmatprep.mubr.bf16.mxu0 0
    %1065 = vmatmul.mubr.bf16.gmra.mxu0 %v871
    %v1066 = vpop.f32.mrf.mxu0
    %v1067 = vadd.f32 0.0, %v1066
    %v1068 = vpop.f32.mrf.mxu0
    %v1069 = vadd.f32 0.0, %v1068
    %v1070 = vpop.f32.mrf.mxu0
    %v1071 = vpop.f32.mrf.mxu0
    %1072 = vdwg.mxu0
    %1073 = vmatprep.subr.bf16.mxu0 %v999
    %1074 = vmatpush1.bf16.msra.mxu0 %v998
    %1075 = vmatprep.subr.bf16.mxu0 %v995
    %1076 = vmatpush1.bf16.msra.mxu0 %v994
    %1077 = vmatprep.subr.bf16.mxu0 %v991
    %1078 = vmatpush1.bf16.msra.mxu0 %v990
    %1079 = vmatprep.subr.bf16.mxu0 %v987
    %1080 = vmatpush1.bf16.msra.mxu0 %v986
    %1081 = vmatprep.subr.bf16.mxu0 %v983
    %1082 = vmatpush1.bf16.msra.mxu0 %v982
    %1083 = vmatprep.subr.bf16.mxu0 %v979
    %1084 = vmatpush1.bf16.msra.mxu0 %v978
    %1085 = vmatprep.subr.bf16.mxu0 %v975
    %1086 = vmatpush1.bf16.msra.mxu0 %v974
    %1087 = vmatprep.subr.bf16.mxu0 %v971
    %1088 = vmatpush1.bf16.msra.mxu0 %v970
    %1089 = vmatprep.subr.bf16.mxu0 0
    %1090 = vmatpush2.bf16.msra.mxu0 0
    %1091 = vmatprep.subr.bf16.mxu0 0
    %1092 = vmatpush2.bf16.msra.mxu0 0
    %1093 = vmatprep.subr.bf16.mxu0 0
    %1094 = vmatpush2.bf16.msra.mxu0 0
    %1095 = vmatprep.subr.bf16.mxu0 0
    %1096 = vmatpush2.bf16.msra.mxu0 0
    %1097 = vmatprep.subr.bf16.mxu0 0
    %1098 = vmatpush2.bf16.msra.mxu0 0
    %1099 = vmatprep.subr.bf16.mxu0 0
    %1100 = vmatpush2.bf16.msra.mxu0 0
    %1101 = vmatprep.subr.bf16.mxu0 0
    %1102 = vmatpush2.bf16.msra.mxu0 0
    %1103 = vmatprep.subr.bf16.mxu0 0
    %1104 = vmatpush2.bf16.msra.mxu0 0
    %1105 = vmatprep.mubr.bf16.mxu0 0
    %1106 = vmatmul.mubr.bf16.gmra.mxu0 %v871
    %v1107 = vpop.f32.mrf.mxu0
    %v1108 = vadd.f32 0.0, %v1107
    %v1109 = vpop.f32.mrf.mxu0
    %v1110 = vadd.f32 0.0, %v1109
    %v1111 = vpop.f32.mrf.mxu0
    %v1112 = vpop.f32.mrf.mxu0
    %1113 = vdwg.mxu0
    %v1114 = vadd.f32 %v790, %v1067
    %v1115 = vadd.f32 %v792, %v1069
    %v1116 = vadd.f32 %v831, %v1108
    %v1117 = vadd.f32 %v833, %v1110
    %v1118 = vtanh.pop %v1114
    %v1119 = vxor.u32 %v1115, 2147483648
    %v1120 = vxor.u32 %v1116, 2147483648
    %v1121 = vxor.u32 %v1117, 2147483648
    %v1122 = vmul.f32 %v1119, 1.442695
    %v1123 = vpow.pop %v1122
    %v1124 = vmul.f32 %v1120, 1.442695
    %v1125 = vpow.pop %v1124
    %v1126 = vmul.f32 %v1121, 1.442695
    %v1127 = vpow.pop %v1126
    %v1128 = vadd.f32 %v1123, 1.0
    %v1129 = vadd.f32 %v1125, 1.0
    %v1130 = vadd.f32 %v1127, 1.0
    %v1131 = vrcp.pop %v1128
    %v1132 = vmul.f32 1.0, %v1131
    %v1133 = vrcp.pop %v1129
    %v1134 = vmul.f32 1.0, %v1133
    %v1135 = vrcp.pop %v1130
    %v1136 = vmul.f32 1.0, %v1135
    %v1137 = vmul.f32 %v1134, %v870
    %v1138 = vmul.f32 %v1132, %v1118
    %v1139 = vadd.f32 %v1137, %v1138
    %v1140 = vtanh.pop %v1139
    %v1141 = vmul.f32 %v1136, %v1140
    %1142 = vst [vmem:[#allocation2] sm:$0x1] %v1141
    %v1143 = vpack.c.bf16 %v1141, %v1141
    %1144 = vmatprep.subr.bf16.mxu0 %v997
    %1145 = vmatpush1.bf16.msra.mxu0 %v996
    %1146 = vmatprep.subr.bf16.mxu0 %v993
    %1147 = vmatpush1.bf16.msra.mxu0 %v992
    %1148 = vmatprep.subr.bf16.mxu0 %v989
    %1149 = vmatpush1.bf16.msra.mxu0 %v988
    %1150 = vmatprep.subr.bf16.mxu0 %v985
    %1151 = vmatpush1.bf16.msra.mxu0 %v984
    %1152 = vmatprep.subr.bf16.mxu0 %v981
    %1153 = vmatpush1.bf16.msra.mxu0 %v980
    %1154 = vmatprep.subr.bf16.mxu0 %v977
    %1155 = vmatpush1.bf16.msra.mxu0 %v976
    %1156 = vmatprep.subr.bf16.mxu0 %v973
    %1157 = vmatpush1.bf16.msra.mxu0 %v972
    %1158 = vmatprep.subr.bf16.mxu0 %v969
    %1159 = vmatpush1.bf16.msra.mxu0 %v968
    %1160 = vmatprep.subr.bf16.mxu0 0
    %1161 = vmatpush2.bf16.msra.mxu0 0
    %1162 = vmatprep.subr.bf16.mxu0 0
    %1163 = vmatpush2.bf16.msra.mxu0 0
    %1164 = vmatprep.subr.bf16.mxu0 0
    %1165 = vmatpush2.bf16.msra.mxu0 0
    %1166 = vmatprep.subr.bf16.mxu0 0
    %1167 = vmatpush2.bf16.msra.mxu0 0
    %1168 = vmatprep.subr.bf16.mxu0 0
    %1169 = vmatpush2.bf16.msra.mxu0 0
    %1170 = vmatprep.subr.bf16.mxu0 0
    %1171 = vmatpush2.bf16.msra.mxu0 0
    %1172 = vmatprep.subr.bf16.mxu0 0
    %1173 = vmatpush2.bf16.msra.mxu0 0
    %1174 = vmatprep.subr.bf16.mxu0 0
    %1175 = vmatpush2.bf16.msra.mxu0 0
    %1176 = vmatprep.mubr.bf16.mxu0 0
    %1177 = vmatmul.mubr.bf16.gmra.mxu0 %v1143
    %v1178 = vpop.f32.mrf.mxu0
    %v1179 = vadd.f32 0.0, %v1178
    %v1180 = vpop.f32.mrf.mxu0
    %v1181 = vadd.f32 0.0, %v1180
    %v1182 = vpop.f32.mrf.mxu0
    %v1183 = vpop.f32.mrf.mxu0
    %1184 = vdwg.mxu0
    %1185 = vmatprep.subr.bf16.mxu0 %v999
    %1186 = vmatpush1.bf16.msra.mxu0 %v998
    %1187 = vmatprep.subr.bf16.mxu0 %v995
    %1188 = vmatpush1.bf16.msra.mxu0 %v994
    %1189 = vmatprep.subr.bf16.mxu0 %v991
    %1190 = vmatpush1.bf16.msra.mxu0 %v990
    %1191 = vmatprep.subr.bf16.mxu0 %v987
    %1192 = vmatpush1.bf16.msra.mxu0 %v986
    %1193 = vmatprep.subr.bf16.mxu0 %v983
    %1194 = vmatpush1.bf16.msra.mxu0 %v982
    %1195 = vmatprep.subr.bf16.mxu0 %v979
    %1196 = vmatpush1.bf16.msra.mxu0 %v978
    %1197 = vmatprep.subr.bf16.mxu0 %v975
    %1198 = vmatpush1.bf16.msra.mxu0 %v974
    %1199 = vmatprep.subr.bf16.mxu0 %v971
    %1200 = vmatpush1.bf16.msra.mxu0 %v970
    %1201 = vmatprep.subr.bf16.mxu0 0
    %1202 = vmatpush2.bf16.msra.mxu0 0
    %1203 = vmatprep.subr.bf16.mxu0 0
    %1204 = vmatpush2.bf16.msra.mxu0 0
    %1205 = vmatprep.subr.bf16.mxu0 0
    %1206 = vmatpush2.bf16.msra.mxu0 0
    %1207 = vmatprep.subr.bf16.mxu0 0
    %1208 = vmatpush2.bf16.msra.mxu0 0
    %1209 = vmatprep.subr.bf16.mxu0 0
    %1210 = vmatpush2.bf16.msra.mxu0 0
    %1211 = vmatprep.subr.bf16.mxu0 0
    %1212 = vmatpush2.bf16.msra.mxu0 0
    %1213 = vmatprep.subr.bf16.mxu0 0
    %1214 = vmatpush2.bf16.msra.mxu0 0
    %1215 = vmatprep.subr.bf16.mxu0 0
    %1216 = vmatpush2.bf16.msra.mxu0 0
    %1217 = vmatprep.mubr.bf16.mxu0 0
    %1218 = vmatmul.mubr.bf16.gmra.mxu0 %v1143
    %v1219 = vpop.f32.mrf.mxu0
    %v1220 = vadd.f32 0.0, %v1219
    %v1221 = vpop.f32.mrf.mxu0
    %v1222 = vadd.f32 0.0, %v1221
    %v1223 = vpop.f32.mrf.mxu0
    %v1224 = vpop.f32.mrf.mxu0
    %1225 = vdwg.mxu0
    %v1230 = vrot.slane %v1179, 7
    %v1231 = vrot.slane %v1181, 7
    %v1232 = vrot.slane %v1220, 7
    %v1233 = vrot.slane %v1222, 7
    %v1238 = vadd.f32 %v790, %v1230
    %v1239 = vadd.f32 %v792, %v1231
    %v1240 = vadd.f32 %v831, %v1232
    %v1241 = vadd.f32 %v833, %v1233
    %v1242 = vtanh.pop %v1238
    %v1243 = vxor.u32 %v1239, 2147483648
    %v1244 = vxor.u32 %v1240, 2147483648
    %v1245 = vxor.u32 %v1241, 2147483648
    %v1246 = vmul.f32 %v1243, 1.442695
    %v1247 = vpow.pop %v1246
    %v1248 = vmul.f32 %v1244, 1.442695
    %v1249 = vpow.pop %v1248
    %v1250 = vmul.f32 %v1245, 1.442695
    %v1251 = vpow.pop %v1250
    %v1252 = vadd.f32 %v1247, 1.0
    %v1253 = vadd.f32 %v1249, 1.0
    %v1254 = vadd.f32 %v1251, 1.0
    %v1255 = vrcp.pop %v1252
    %v1256 = vmul.f32 1.0, %v1255
    %v1257 = vrcp.pop %v1253
    %v1258 = vmul.f32 1.0, %v1257
    %v1259 = vrcp.pop %v1254
    %v1260 = vmul.f32 1.0, %v1259
    %v1262 = vrot.slane %v1139, 7
    %v1264 = vmul.f32 %v1258, %v1262
    %v1265 = vmul.f32 %v1256, %v1242
    %v1266 = vadd.f32 %v1264, %v1265
    %v1267 = vtanh.pop %v1266
    %v1268 = vmul.f32 %v1260, %v1267
    %1269 = vst [vmem:[#allocation2] sm:$0x2] %v1268
    %v1270 = vpack.c.bf16 %v1268, %v1268
    %v1272 = vshrl.u32 %v1270, 16
    %1275 = vmatprep.subr.bf16.mxu0 %v997
    %1276 = vmatpush1.bf16.msra.mxu0 %v996
    %1277 = vmatprep.subr.bf16.mxu0 %v993
    %1278 = vmatpush1.bf16.msra.mxu0 %v992
    %1279 = vmatprep.subr.bf16.mxu0 %v989
    %1280 = vmatpush1.bf16.msra.mxu0 %v988
    %1281 = vmatprep.subr.bf16.mxu0 %v985
    %1282 = vmatpush1.bf16.msra.mxu0 %v984
    %1283 = vmatprep.subr.bf16.mxu0 %v981
    %1284 = vmatpush1.bf16.msra.mxu0 %v980
    %1285 = vmatprep.subr.bf16.mxu0 %v977
    %1286 = vmatpush1.bf16.msra.mxu0 %v976
    %1287 = vmatprep.subr.bf16.mxu0 %v973
    %1288 = vmatpush1.bf16.msra.mxu0 %v972
    %1289 = vmatprep.subr.bf16.mxu0 %v969
    %1290 = vmatpush1.bf16.msra.mxu0 %v968
    %1291 = vmatprep.subr.bf16.mxu0 0
    %1292 = vmatpush2.bf16.msra.mxu0 0
    %1293 = vmatprep.subr.bf16.mxu0 0
    %1294 = vmatpush2.bf16.msra.mxu0 0
    %1295 = vmatprep.subr.bf16.mxu0 0
    %1296 = vmatpush2.bf16.msra.mxu0 0
    %1297 = vmatprep.subr.bf16.mxu0 0
    %1298 = vmatpush2.bf16.msra.mxu0 0
    %1299 = vmatprep.subr.bf16.mxu0 0
    %1300 = vmatpush2.bf16.msra.mxu0 0
    %1301 = vmatprep.subr.bf16.mxu0 0
    %1302 = vmatpush2.bf16.msra.mxu0 0
    %1303 = vmatprep.subr.bf16.mxu0 0
    %1304 = vmatpush2.bf16.msra.mxu0 0
    %1305 = vmatprep.subr.bf16.mxu0 0
    %1306 = vmatpush2.bf16.msra.mxu0 0
    %1307 = vmatprep.mubr.bf16.mxu0 0
    %1308 = vmatmul.mubr.bf16.gmra.mxu0 %v1272
    %v1309 = vpop.f32.mrf.mxu0
    %v1310 = vadd.f32 0.0, %v1309
    %v1311 = vpop.f32.mrf.mxu0
    %v1312 = vadd.f32 0.0, %v1311
    %v1313 = vpop.f32.mrf.mxu0
    %v1314 = vpop.f32.mrf.mxu0
    %1315 = vdwg.mxu0
    %1316 = vmatprep.subr.bf16.mxu0 %v999
    %1317 = vmatpush1.bf16.msra.mxu0 %v998
    %1318 = vmatprep.subr.bf16.mxu0 %v995
    %1319 = vmatpush1.bf16.msra.mxu0 %v994
    %1320 = vmatprep.subr.bf16.mxu0 %v991
    %1321 = vmatpush1.bf16.msra.mxu0 %v990
    %1322 = vmatprep.subr.bf16.mxu0 %v987
    %1323 = vmatpush1.bf16.msra.mxu0 %v986
    %1324 = vmatprep.subr.bf16.mxu0 %v983
    %1325 = vmatpush1.bf16.msra.mxu0 %v982
    %1326 = vmatprep.subr.bf16.mxu0 %v979
    %1327 = vmatpush1.bf16.msra.mxu0 %v978
    %1328 = vmatprep.subr.bf16.mxu0 %v975
    %1329 = vmatpush1.bf16.msra.mxu0 %v974
    %1330 = vmatprep.subr.bf16.mxu0 %v971
    %1331 = vmatpush1.bf16.msra.mxu0 %v970
    %1332 = vmatprep.subr.bf16.mxu0 0
    %1333 = vmatpush2.bf16.msra.mxu0 0
    %1334 = vmatprep.subr.bf16.mxu0 0
    %1335 = vmatpush2.bf16.msra.mxu0 0
    %1336 = vmatprep.subr.bf16.mxu0 0
    %1337 = vmatpush2.bf16.msra.mxu0 0
    %1338 = vmatprep.subr.bf16.mxu0 0
    %1339 = vmatpush2.bf16.msra.mxu0 0
    %1340 = vmatprep.subr.bf16.mxu0 0
    %1341 = vmatpush2.bf16.msra.mxu0 0
    %1342 = vmatprep.subr.bf16.mxu0 0
    %1343 = vmatpush2.bf16.msra.mxu0 0
    %1344 = vmatprep.subr.bf16.mxu0 0
    %1345 = vmatpush2.bf16.msra.mxu0 0
    %1346 = vmatprep.subr.bf16.mxu0 0
    %1347 = vmatpush2.bf16.msra.mxu0 0
    %1348 = vmatprep.mubr.bf16.mxu0 0
    %1349 = vmatmul.mubr.bf16.gmra.mxu0 %v1272
    %v1350 = vpop.f32.mrf.mxu0
    %v1351 = vadd.f32 0.0, %v1350
    %v1352 = vpop.f32.mrf.mxu0
    %v1353 = vadd.f32 0.0, %v1352
    %v1354 = vpop.f32.mrf.mxu0
    %v1355 = vpop.f32.mrf.mxu0
    %1356 = vdwg.mxu0
    %v1361 = vrot.slane %v1310, 6
    %v1362 = vrot.slane %v1312, 6
    %v1363 = vrot.slane %v1351, 6
    %v1364 = vrot.slane %v1353, 6
    %v1369 = vadd.f32 %v790, %v1361
    %v1370 = vadd.f32 %v792, %v1362
    %v1371 = vadd.f32 %v831, %v1363
    %v1372 = vadd.f32 %v833, %v1364
    %v1373 = vtanh.pop %v1369
    %v1374 = vxor.u32 %v1370, 2147483648
    %v1375 = vxor.u32 %v1371, 2147483648
    %v1376 = vxor.u32 %v1372, 2147483648
    %v1377 = vmul.f32 %v1374, 1.442695
    %v1378 = vpow.pop %v1377
    %v1379 = vmul.f32 %v1375, 1.442695
    %v1380 = vpow.pop %v1379
    %v1381 = vmul.f32 %v1376, 1.442695
    %v1382 = vpow.pop %v1381
    %v1383 = vadd.f32 %v1378, 1.0
    %v1384 = vadd.f32 %v1380, 1.0
    %v1385 = vadd.f32 %v1382, 1.0
    %v1386 = vrcp.pop %v1383
    %v1387 = vmul.f32 1.0, %v1386
    %v1388 = vrcp.pop %v1384
    %v1389 = vmul.f32 1.0, %v1388
    %v1390 = vrcp.pop %v1385
    %v1391 = vmul.f32 1.0, %v1390
    %v1393 = vrot.slane %v1266, 7
    %v1395 = vmul.f32 %v1389, %v1393
    %v1396 = vmul.f32 %v1387, %v1373
    %v1397 = vadd.f32 %v1395, %v1396
    %v1398 = vtanh.pop %v1397
    %v1399 = vmul.f32 %v1391, %v1398
    %1400 = vst [vmem:[#allocation2] sm:$0x4] %v1399
    %v1401 = vpack.c.bf16 %v1399, %v1399
    %v1403 = vrot.slane %v1401, 1
    %1405 = vmatprep.subr.bf16.mxu0 %v997
    %1406 = vmatpush1.bf16.msra.mxu0 %v996
    %1407 = vmatprep.subr.bf16.mxu0 %v993
    %1408 = vmatpush1.bf16.msra.mxu0 %v992
    %1409 = vmatprep.subr.bf16.mxu0 %v989
    %1410 = vmatpush1.bf16.msra.mxu0 %v988
    %1411 = vmatprep.subr.bf16.mxu0 %v985
    %1412 = vmatpush1.bf16.msra.mxu0 %v984
    %1413 = vmatprep.subr.bf16.mxu0 %v981
    %1414 = vmatpush1.bf16.msra.mxu0 %v980
    %1415 = vmatprep.subr.bf16.mxu0 %v977
    %1416 = vmatpush1.bf16.msra.mxu0 %v976
    %1417 = vmatprep.subr.bf16.mxu0 %v973
    %1418 = vmatpush1.bf16.msra.mxu0 %v972
    %1419 = vmatprep.subr.bf16.mxu0 %v969
    %1420 = vmatpush1.bf16.msra.mxu0 %v968
    %1421 = vmatprep.subr.bf16.mxu0 0
    %1422 = vmatpush2.bf16.msra.mxu0 0
    %1423 = vmatprep.subr.bf16.mxu0 0
    %1424 = vmatpush2.bf16.msra.mxu0 0
    %1425 = vmatprep.subr.bf16.mxu0 0
    %1426 = vmatpush2.bf16.msra.mxu0 0
    %1427 = vmatprep.subr.bf16.mxu0 0
    %1428 = vmatpush2.bf16.msra.mxu0 0
    %1429 = vmatprep.subr.bf16.mxu0 0
    %1430 = vmatpush2.bf16.msra.mxu0 0
    %1431 = vmatprep.subr.bf16.mxu0 0
    %1432 = vmatpush2.bf16.msra.mxu0 0
    %1433 = vmatprep.subr.bf16.mxu0 0
    %1434 = vmatpush2.bf16.msra.mxu0 0
    %1435 = vmatprep.subr.bf16.mxu0 0
    %1436 = vmatpush2.bf16.msra.mxu0 0
    %1437 = vmatprep.mubr.bf16.mxu0 0
    %1438 = vmatmul.mubr.bf16.gmra.mxu0 %v1403
    %v1439 = vpop.f32.mrf.mxu0
    %v1440 = vadd.f32 0.0, %v1439
    %v1441 = vpop.f32.mrf.mxu0
    %v1442 = vadd.f32 0.0, %v1441
    %v1443 = vpop.f32.mrf.mxu0
    %v1444 = vpop.f32.mrf.mxu0
    %1445 = vdwg.mxu0
    %1446 = vmatprep.subr.bf16.mxu0 %v999
    %1447 = vmatpush1.bf16.msra.mxu0 %v998
    %1448 = vmatprep.subr.bf16.mxu0 %v995
    %1449 = vmatpush1.bf16.msra.mxu0 %v994
    %1450 = vmatprep.subr.bf16.mxu0 %v991
    %1451 = vmatpush1.bf16.msra.mxu0 %v990
    %1452 = vmatprep.subr.bf16.mxu0 %v987
    %1453 = vmatpush1.bf16.msra.mxu0 %v986
    %1454 = vmatprep.subr.bf16.mxu0 %v983
    %1455 = vmatpush1.bf16.msra.mxu0 %v982
    %1456 = vmatprep.subr.bf16.mxu0 %v979
    %1457 = vmatpush1.bf16.msra.mxu0 %v978
    %1458 = vmatprep.subr.bf16.mxu0 %v975
    %1459 = vmatpush1.bf16.msra.mxu0 %v974
    %1460 = vmatprep.subr.bf16.mxu0 %v971
    %1461 = vmatpush1.bf16.msra.mxu0 %v970
    %1462 = vmatprep.subr.bf16.mxu0 0
    %1463 = vmatpush2.bf16.msra.mxu0 0
    %1464 = vmatprep.subr.bf16.mxu0 0
    %1465 = vmatpush2.bf16.msra.mxu0 0
    %1466 = vmatprep.subr.bf16.mxu0 0
    %1467 = vmatpush2.bf16.msra.mxu0 0
    %1468 = vmatprep.subr.bf16.mxu0 0
    %1469 = vmatpush2.bf16.msra.mxu0 0
    %1470 = vmatprep.subr.bf16.mxu0 0
    %1471 = vmatpush2.bf16.msra.mxu0 0
    %1472 = vmatprep.subr.bf16.mxu0 0
    %1473 = vmatpush2.bf16.msra.mxu0 0
    %1474 = vmatprep.subr.bf16.mxu0 0
    %1475 = vmatpush2.bf16.msra.mxu0 0
    %1476 = vmatprep.subr.bf16.mxu0 0
    %1477 = vmatpush2.bf16.msra.mxu0 0
    %1478 = vmatprep.mubr.bf16.mxu0 0
    %1479 = vmatmul.mubr.bf16.gmra.mxu0 %v1403
    %v1480 = vpop.f32.mrf.mxu0
    %v1481 = vadd.f32 0.0, %v1480
    %v1482 = vpop.f32.mrf.mxu0
    %v1483 = vadd.f32 0.0, %v1482
    %v1484 = vpop.f32.mrf.mxu0
    %v1485 = vpop.f32.mrf.mxu0
    %1486 = vdwg.mxu0
    %v1491 = vrot.slane %v1440, 5
    %v1492 = vrot.slane %v1442, 5
    %v1493 = vrot.slane %v1481, 5
    %v1494 = vrot.slane %v1483, 5
    %v1499 = vadd.f32 %v790, %v1491
    %v1500 = vadd.f32 %v792, %v1492
    %v1501 = vadd.f32 %v831, %v1493
    %v1502 = vadd.f32 %v833, %v1494
    %v1503 = vtanh.pop %v1499
    %v1504 = vxor.u32 %v1500, 2147483648
    %v1505 = vxor.u32 %v1501, 2147483648
    %v1506 = vxor.u32 %v1502, 2147483648
    %v1507 = vmul.f32 %v1504, 1.442695
    %v1508 = vpow.pop %v1507
    %v1509 = vmul.f32 %v1505, 1.442695
    %v1510 = vpow.pop %v1509
    %v1511 = vmul.f32 %v1506, 1.442695
    %v1512 = vpow.pop %v1511
    %v1513 = vadd.f32 %v1508, 1.0
    %v1514 = vadd.f32 %v1510, 1.0
    %v1515 = vadd.f32 %v1512, 1.0
    %v1516 = vrcp.pop %v1513
    %v1517 = vmul.f32 1.0, %v1516
    %v1518 = vrcp.pop %v1514
    %v1519 = vmul.f32 1.0, %v1518
    %v1520 = vrcp.pop %v1515
    %v1521 = vmul.f32 1.0, %v1520
    %v1523 = vrot.slane %v1397, 7
    %v1525 = vmul.f32 %v1519, %v1523
    %v1526 = vmul.f32 %v1517, %v1503
    %v1527 = vadd.f32 %v1525, %v1526
    %v1528 = vtanh.pop %v1527
    %v1529 = vmul.f32 %v1521, %v1528
    %1530 = vst [vmem:[#allocation2] sm:$0x8] %v1529
    %v1531 = vpack.c.bf16 %v1529, %v1529
    %v1533 = vshrl.u32 %v1531, 16
    %v1535 = vrot.slane %v1533, 1
    %1537 = vmatprep.subr.bf16.mxu0 %v997
    %1538 = vmatpush1.bf16.msra.mxu0 %v996
    %1539 = vmatprep.subr.bf16.mxu0 %v993
    %1540 = vmatpush1.bf16.msra.mxu0 %v992
    %1541 = vmatprep.subr.bf16.mxu0 %v989
    %1542 = vmatpush1.bf16.msra.mxu0 %v988
    %1543 = vmatprep.subr.bf16.mxu0 %v985
    %1544 = vmatpush1.bf16.msra.mxu0 %v984
    %1545 = vmatprep.subr.bf16.mxu0 %v981
    %1546 = vmatpush1.bf16.msra.mxu0 %v980
    %1547 = vmatprep.subr.bf16.mxu0 %v977
    %1548 = vmatpush1.bf16.msra.mxu0 %v976
    %1549 = vmatprep.subr.bf16.mxu0 %v973
    %1550 = vmatpush1.bf16.msra.mxu0 %v972
    %1551 = vmatprep.subr.bf16.mxu0 %v969
    %1552 = vmatpush1.bf16.msra.mxu0 %v968
    %1553 = vmatprep.subr.bf16.mxu0 0
    %1554 = vmatpush2.bf16.msra.mxu0 0
    %1555 = vmatprep.subr.bf16.mxu0 0
    %1556 = vmatpush2.bf16.msra.mxu0 0
    %1557 = vmatprep.subr.bf16.mxu0 0
    %1558 = vmatpush2.bf16.msra.mxu0 0
    %1559 = vmatprep.subr.bf16.mxu0 0
    %1560 = vmatpush2.bf16.msra.mxu0 0
    %1561 = vmatprep.subr.bf16.mxu0 0
    %1562 = vmatpush2.bf16.msra.mxu0 0
    %1563 = vmatprep.subr.bf16.mxu0 0
    %1564 = vmatpush2.bf16.msra.mxu0 0
    %1565 = vmatprep.subr.bf16.mxu0 0
    %1566 = vmatpush2.bf16.msra.mxu0 0
    %1567 = vmatprep.subr.bf16.mxu0 0
    %1568 = vmatpush2.bf16.msra.mxu0 0
    %1569 = vmatprep.mubr.bf16.mxu0 0
    %1570 = vmatmul.mubr.bf16.gmra.mxu0 %v1535
    %v1571 = vpop.f32.mrf.mxu0
    %v1572 = vadd.f32 0.0, %v1571
    %v1573 = vpop.f32.mrf.mxu0
    %v1574 = vadd.f32 0.0, %v1573
    %v1575 = vpop.f32.mrf.mxu0
    %v1576 = vpop.f32.mrf.mxu0
    %1577 = vdwg.mxu0
    %1578 = vmatprep.subr.bf16.mxu0 %v999
    %1579 = vmatpush1.bf16.msra.mxu0 %v998
    %1580 = vmatprep.subr.bf16.mxu0 %v995
    %1581 = vmatpush1.bf16.msra.mxu0 %v994
    %1582 = vmatprep.subr.bf16.mxu0 %v991
    %1583 = vmatpush1.bf16.msra.mxu0 %v990
    %1584 = vmatprep.subr.bf16.mxu0 %v987
    %1585 = vmatpush1.bf16.msra.mxu0 %v986
    %1586 = vmatprep.subr.bf16.mxu0 %v983
    %1587 = vmatpush1.bf16.msra.mxu0 %v982
    %1588 = vmatprep.subr.bf16.mxu0 %v979
    %1589 = vmatpush1.bf16.msra.mxu0 %v978
    %1590 = vmatprep.subr.bf16.mxu0 %v975
    %1591 = vmatpush1.bf16.msra.mxu0 %v974
    %1592 = vmatprep.subr.bf16.mxu0 %v971
    %1593 = vmatpush1.bf16.msra.mxu0 %v970
    %1594 = vmatprep.subr.bf16.mxu0 0
    %1595 = vmatpush2.bf16.msra.mxu0 0
    %1596 = vmatprep.subr.bf16.mxu0 0
    %1597 = vmatpush2.bf16.msra.mxu0 0
    %1598 = vmatprep.subr.bf16.mxu0 0
    %1599 = vmatpush2.bf16.msra.mxu0 0
    %1600 = vmatprep.subr.bf16.mxu0 0
    %1601 = vmatpush2.bf16.msra.mxu0 0
    %1602 = vmatprep.subr.bf16.mxu0 0
    %1603 = vmatpush2.bf16.msra.mxu0 0
    %1604 = vmatprep.subr.bf16.mxu0 0
    %1605 = vmatpush2.bf16.msra.mxu0 0
    %1606 = vmatprep.subr.bf16.mxu0 0
    %1607 = vmatpush2.bf16.msra.mxu0 0
    %1608 = vmatprep.subr.bf16.mxu0 0
    %1609 = vmatpush2.bf16.msra.mxu0 0
    %1610 = vmatprep.mubr.bf16.mxu0 0
    %1611 = vmatmul.mubr.bf16.gmra.mxu0 %v1535
    %v1612 = vpop.f32.mrf.mxu0
    %v1613 = vadd.f32 0.0, %v1612
    %v1614 = vpop.f32.mrf.mxu0
    %v1615 = vadd.f32 0.0, %v1614
    %v1616 = vpop.f32.mrf.mxu0
    %v1617 = vpop.f32.mrf.mxu0
    %1618 = vdwg.mxu0
    %v1623 = vrot.slane %v1572, 4
    %v1624 = vrot.slane %v1574, 4
    %v1625 = vrot.slane %v1613, 4
    %v1626 = vrot.slane %v1615, 4
    %v1631 = vadd.f32 %v790, %v1623
    %v1632 = vadd.f32 %v792, %v1624
    %v1633 = vadd.f32 %v831, %v1625
    %v1634 = vadd.f32 %v833, %v1626
    %v1635 = vtanh.pop %v1631
    %v1636 = vxor.u32 %v1632, 2147483648
    %v1637 = vxor.u32 %v1633, 2147483648
    %v1638 = vxor.u32 %v1634, 2147483648
    %v1639 = vmul.f32 %v1636, 1.442695
    %v1640 = vpow.pop %v1639
    %v1641 = vmul.f32 %v1637, 1.442695
    %v1642 = vpow.pop %v1641
    %v1643 = vmul.f32 %v1638, 1.442695
    %v1644 = vpow.pop %v1643
    %v1645 = vadd.f32 %v1640, 1.0
    %v1646 = vadd.f32 %v1642, 1.0
    %v1647 = vadd.f32 %v1644, 1.0
    %v1648 = vrcp.pop %v1645
    %v1649 = vmul.f32 1.0, %v1648
    %v1650 = vrcp.pop %v1646
    %v1651 = vmul.f32 1.0, %v1650
    %v1652 = vrcp.pop %v1647
    %v1653 = vmul.f32 1.0, %v1652
    %v1655 = vrot.slane %v1527, 7
    %v1657 = vmul.f32 %v1651, %v1655
    %v1658 = vmul.f32 %v1649, %v1635
    %v1659 = vadd.f32 %v1657, %v1658
    %v1660 = vtanh.pop %v1659
    %v1661 = vmul.f32 %v1653, %v1660
    %1662 = vst [vmem:[#allocation2] sm:$0x10] %v1661
    %v1663 = vpack.c.bf16 %v1661, %v1661
    %v1665 = vrot.slane %v1663, 2
    %1667 = vmatprep.subr.bf16.mxu0 %v997
    %1668 = vmatpush1.bf16.msra.mxu0 %v996
    %1669 = vmatprep.subr.bf16.mxu0 %v993
    %1670 = vmatpush1.bf16.msra.mxu0 %v992
    %1671 = vmatprep.subr.bf16.mxu0 %v989
    %1672 = vmatpush1.bf16.msra.mxu0 %v988
    %1673 = vmatprep.subr.bf16.mxu0 %v985
    %1674 = vmatpush1.bf16.msra.mxu0 %v984
    %1675 = vmatprep.subr.bf16.mxu0 %v981
    %1676 = vmatpush1.bf16.msra.mxu0 %v980
    %1677 = vmatprep.subr.bf16.mxu0 %v977
    %1678 = vmatpush1.bf16.msra.mxu0 %v976
    %1679 = vmatprep.subr.bf16.mxu0 %v973
    %1680 = vmatpush1.bf16.msra.mxu0 %v972
    %1681 = vmatprep.subr.bf16.mxu0 %v969
    %1682 = vmatpush1.bf16.msra.mxu0 %v968
    %1683 = vmatprep.subr.bf16.mxu0 0
    %1684 = vmatpush2.bf16.msra.mxu0 0
    %1685 = vmatprep.subr.bf16.mxu0 0
    %1686 = vmatpush2.bf16.msra.mxu0 0
    %1687 = vmatprep.subr.bf16.mxu0 0
    %1688 = vmatpush2.bf16.msra.mxu0 0
    %1689 = vmatprep.subr.bf16.mxu0 0
    %1690 = vmatpush2.bf16.msra.mxu0 0
    %1691 = vmatprep.subr.bf16.mxu0 0
    %1692 = vmatpush2.bf16.msra.mxu0 0
    %1693 = vmatprep.subr.bf16.mxu0 0
    %1694 = vmatpush2.bf16.msra.mxu0 0
    %1695 = vmatprep.subr.bf16.mxu0 0
    %1696 = vmatpush2.bf16.msra.mxu0 0
    %1697 = vmatprep.subr.bf16.mxu0 0
    %1698 = vmatpush2.bf16.msra.mxu0 0
    %1699 = vmatprep.mubr.bf16.mxu0 0
    %1700 = vmatmul.mubr.bf16.gmra.mxu0 %v1665
    %v1701 = vpop.f32.mrf.mxu0
    %v1702 = vadd.f32 0.0, %v1701
    %v1703 = vpop.f32.mrf.mxu0
    %v1704 = vadd.f32 0.0, %v1703
    %v1705 = vpop.f32.mrf.mxu0
    %v1706 = vpop.f32.mrf.mxu0
    %1707 = vdwg.mxu0
    %1708 = vmatprep.subr.bf16.mxu0 %v999
    %1709 = vmatpush1.bf16.msra.mxu0 %v998
    %1710 = vmatprep.subr.bf16.mxu0 %v995
    %1711 = vmatpush1.bf16.msra.mxu0 %v994
    %1712 = vmatprep.subr.bf16.mxu0 %v991
    %1713 = vmatpush1.bf16.msra.mxu0 %v990
    %1714 = vmatprep.subr.bf16.mxu0 %v987
    %1715 = vmatpush1.bf16.msra.mxu0 %v986
    %1716 = vmatprep.subr.bf16.mxu0 %v983
    %1717 = vmatpush1.bf16.msra.mxu0 %v982
    %1718 = vmatprep.subr.bf16.mxu0 %v979
    %1719 = vmatpush1.bf16.msra.mxu0 %v978
    %1720 = vmatprep.subr.bf16.mxu0 %v975
    %1721 = vmatpush1.bf16.msra.mxu0 %v974
    %1722 = vmatprep.subr.bf16.mxu0 %v971
    %1723 = vmatpush1.bf16.msra.mxu0 %v970
    %1724 = vmatprep.subr.bf16.mxu0 0
    %1725 = vmatpush2.bf16.msra.mxu0 0
    %1726 = vmatprep.subr.bf16.mxu0 0
    %1727 = vmatpush2.bf16.msra.mxu0 0
    %1728 = vmatprep.subr.bf16.mxu0 0
    %1729 = vmatpush2.bf16.msra.mxu0 0
    %1730 = vmatprep.subr.bf16.mxu0 0
    %1731 = vmatpush2.bf16.msra.mxu0 0
    %1732 = vmatprep.subr.bf16.mxu0 0
    %1733 = vmatpush2.bf16.msra.mxu0 0
    %1734 = vmatprep.subr.bf16.mxu0 0
    %1735 = vmatpush2.bf16.msra.mxu0 0
    %1736 = vmatprep.subr.bf16.mxu0 0
    %1737 = vmatpush2.bf16.msra.mxu0 0
    %1738 = vmatprep.subr.bf16.mxu0 0
    %1739 = vmatpush2.bf16.msra.mxu0 0
    %1740 = vmatprep.mubr.bf16.mxu0 0
    %1741 = vmatmul.mubr.bf16.gmra.mxu0 %v1665
    %v1742 = vpop.f32.mrf.mxu0
    %v1743 = vadd.f32 0.0, %v1742
    %v1744 = vpop.f32.mrf.mxu0
    %v1745 = vadd.f32 0.0, %v1744
    %v1746 = vpop.f32.mrf.mxu0
    %v1747 = vpop.f32.mrf.mxu0
    %1748 = vdwg.mxu0
    %v1753 = vrot.slane %v1702, 3
    %v1754 = vrot.slane %v1704, 3
    %v1755 = vrot.slane %v1743, 3
    %v1756 = vrot.slane %v1745, 3
    %v1761 = vadd.f32 %v790, %v1753
    %v1762 = vadd.f32 %v792, %v1754
    %v1763 = vadd.f32 %v831, %v1755
    %v1764 = vadd.f32 %v833, %v1756
    %v1765 = vtanh.pop %v1761
    %v1766 = vxor.u32 %v1762, 2147483648
    %v1767 = vxor.u32 %v1763, 2147483648
    %v1768 = vxor.u32 %v1764, 2147483648
    %v1769 = vmul.f32 %v1766, 1.442695
    %v1770 = vpow.pop %v1769
    %v1771 = vmul.f32 %v1767, 1.442695
    %v1772 = vpow.pop %v1771
    %v1773 = vmul.f32 %v1768, 1.442695
    %v1774 = vpow.pop %v1773
    %v1775 = vadd.f32 %v1770, 1.0
    %v1776 = vadd.f32 %v1772, 1.0
    %v1777 = vadd.f32 %v1774, 1.0
    %v1778 = vrcp.pop %v1775
    %v1779 = vmul.f32 1.0, %v1778
    %v1780 = vrcp.pop %v1776
    %v1781 = vmul.f32 1.0, %v1780
    %v1782 = vrcp.pop %v1777
    %v1783 = vmul.f32 1.0, %v1782
    %v1785 = vrot.slane %v1659, 7
    %v1787 = vmul.f32 %v1781, %v1785
    %v1788 = vmul.f32 %v1779, %v1765
    %v1789 = vadd.f32 %v1787, %v1788
    %v1790 = vtanh.pop %v1789
    %v1791 = vmul.f32 %v1783, %v1790
    %1792 = vst [vmem:[#allocation2] sm:$0x20] %v1791
    %v1793 = vpack.c.bf16 %v1791, %v1791
    %v1795 = vshrl.u32 %v1793, 16
    %v1797 = vrot.slane %v1795, 2
    %1799 = vmatprep.subr.bf16.mxu0 %v997
    %1800 = vmatpush1.bf16.msra.mxu0 %v996
    %1801 = vmatprep.subr.bf16.mxu0 %v993
    %1802 = vmatpush1.bf16.msra.mxu0 %v992
    %1803 = vmatprep.subr.bf16.mxu0 %v989
    %1804 = vmatpush1.bf16.msra.mxu0 %v988
    %1805 = vmatprep.subr.bf16.mxu0 %v985
    %1806 = vmatpush1.bf16.msra.mxu0 %v984
    %1807 = vmatprep.subr.bf16.mxu0 %v981
    %1808 = vmatpush1.bf16.msra.mxu0 %v980
    %1809 = vmatprep.subr.bf16.mxu0 %v977
    %1810 = vmatpush1.bf16.msra.mxu0 %v976
    %1811 = vmatprep.subr.bf16.mxu0 %v973
    %1812 = vmatpush1.bf16.msra.mxu0 %v972
    %1813 = vmatprep.subr.bf16.mxu0 %v969
    %1814 = vmatpush1.bf16.msra.mxu0 %v968
    %1815 = vmatprep.subr.bf16.mxu0 0
    %1816 = vmatpush2.bf16.msra.mxu0 0
    %1817 = vmatprep.subr.bf16.mxu0 0
    %1818 = vmatpush2.bf16.msra.mxu0 0
    %1819 = vmatprep.subr.bf16.mxu0 0
    %1820 = vmatpush2.bf16.msra.mxu0 0
    %1821 = vmatprep.subr.bf16.mxu0 0
    %1822 = vmatpush2.bf16.msra.mxu0 0
    %1823 = vmatprep.subr.bf16.mxu0 0
    %1824 = vmatpush2.bf16.msra.mxu0 0
    %1825 = vmatprep.subr.bf16.mxu0 0
    %1826 = vmatpush2.bf16.msra.mxu0 0
    %1827 = vmatprep.subr.bf16.mxu0 0
    %1828 = vmatpush2.bf16.msra.mxu0 0
    %1829 = vmatprep.subr.bf16.mxu0 0
    %1830 = vmatpush2.bf16.msra.mxu0 0
    %1831 = vmatprep.mubr.bf16.mxu0 0
    %1832 = vmatmul.mubr.bf16.gmra.mxu0 %v1797
    %v1833 = vpop.f32.mrf.mxu0
    %v1834 = vadd.f32 0.0, %v1833
    %v1835 = vpop.f32.mrf.mxu0
    %v1836 = vadd.f32 0.0, %v1835
    %v1837 = vpop.f32.mrf.mxu0
    %v1838 = vpop.f32.mrf.mxu0
    %1839 = vdwg.mxu0
    %1840 = vmatprep.subr.bf16.mxu0 %v999
    %1841 = vmatpush1.bf16.msra.mxu0 %v998
    %1842 = vmatprep.subr.bf16.mxu0 %v995
    %1843 = vmatpush1.bf16.msra.mxu0 %v994
    %1844 = vmatprep.subr.bf16.mxu0 %v991
    %1845 = vmatpush1.bf16.msra.mxu0 %v990
    %1846 = vmatprep.subr.bf16.mxu0 %v987
    %1847 = vmatpush1.bf16.msra.mxu0 %v986
    %1848 = vmatprep.subr.bf16.mxu0 %v983
    %1849 = vmatpush1.bf16.msra.mxu0 %v982
    %1850 = vmatprep.subr.bf16.mxu0 %v979
    %1851 = vmatpush1.bf16.msra.mxu0 %v978
    %1852 = vmatprep.subr.bf16.mxu0 %v975
    %1853 = vmatpush1.bf16.msra.mxu0 %v974
    %1854 = vmatprep.subr.bf16.mxu0 %v971
    %1855 = vmatpush1.bf16.msra.mxu0 %v970
    %1856 = vmatprep.subr.bf16.mxu0 0
    %1857 = vmatpush2.bf16.msra.mxu0 0
    %1858 = vmatprep.subr.bf16.mxu0 0
    %1859 = vmatpush2.bf16.msra.mxu0 0
    %1860 = vmatprep.subr.bf16.mxu0 0
    %1861 = vmatpush2.bf16.msra.mxu0 0
    %1862 = vmatprep.subr.bf16.mxu0 0
    %1863 = vmatpush2.bf16.msra.mxu0 0
    %1864 = vmatprep.subr.bf16.mxu0 0
    %1865 = vmatpush2.bf16.msra.mxu0 0
    %1866 = vmatprep.subr.bf16.mxu0 0
    %1867 = vmatpush2.bf16.msra.mxu0 0
    %1868 = vmatprep.subr.bf16.mxu0 0
    %1869 = vmatpush2.bf16.msra.mxu0 0
    %1870 = vmatprep.subr.bf16.mxu0 0
    %1871 = vmatpush2.bf16.msra.mxu0 0
    %1872 = vmatprep.mubr.bf16.mxu0 0
    %1873 = vmatmul.mubr.bf16.gmra.mxu0 %v1797
    %v1874 = vpop.f32.mrf.mxu0
    %v1875 = vadd.f32 0.0, %v1874
    %v1876 = vpop.f32.mrf.mxu0
    %v1877 = vadd.f32 0.0, %v1876
    %v1878 = vpop.f32.mrf.mxu0
    %v1879 = vpop.f32.mrf.mxu0
    %1880 = vdwg.mxu0
    %v1885 = vrot.slane %v1834, 2
    %v1886 = vrot.slane %v1836, 2
    %v1887 = vrot.slane %v1875, 2
    %v1888 = vrot.slane %v1877, 2
    %v1893 = vadd.f32 %v790, %v1885
    %v1894 = vadd.f32 %v792, %v1886
    %v1895 = vadd.f32 %v831, %v1887
    %v1896 = vadd.f32 %v833, %v1888
    %v1897 = vtanh.pop %v1893
    %v1898 = vxor.u32 %v1894, 2147483648
    %v1899 = vxor.u32 %v1895, 2147483648
    %v1900 = vxor.u32 %v1896, 2147483648
    %v1901 = vmul.f32 %v1898, 1.442695
    %v1902 = vpow.pop %v1901
    %v1903 = vmul.f32 %v1899, 1.442695
    %v1904 = vpow.pop %v1903
    %v1905 = vmul.f32 %v1900, 1.442695
    %v1906 = vpow.pop %v1905
    %v1907 = vadd.f32 %v1902, 1.0
    %v1908 = vadd.f32 %v1904, 1.0
    %v1909 = vadd.f32 %v1906, 1.0
    %v1910 = vrcp.pop %v1907
    %v1911 = vmul.f32 1.0, %v1910
    %v1912 = vrcp.pop %v1908
    %v1913 = vmul.f32 1.0, %v1912
    %v1914 = vrcp.pop %v1909
    %v1915 = vmul.f32 1.0, %v1914
    %v1917 = vrot.slane %v1789, 7
    %v1919 = vmul.f32 %v1913, %v1917
    %v1920 = vmul.f32 %v1911, %v1897
    %v1921 = vadd.f32 %v1919, %v1920
    %v1922 = vtanh.pop %v1921
    %v1923 = vmul.f32 %v1915, %v1922
    %1924 = vst [vmem:[#allocation2] sm:$0x40] %v1923
    %v1925 = vpack.c.bf16 %v1923, %v1923
    %v1927 = vrot.slane %v1925, 3
    %1929 = vmatprep.subr.bf16.mxu0 %v997
    %1930 = vmatpush1.bf16.msra.mxu0 %v996
    %1931 = vmatprep.subr.bf16.mxu0 %v993
    %1932 = vmatpush1.bf16.msra.mxu0 %v992
    %1933 = vmatprep.subr.bf16.mxu0 %v989
    %1934 = vmatpush1.bf16.msra.mxu0 %v988
    %1935 = vmatprep.subr.bf16.mxu0 %v985
    %1936 = vmatpush1.bf16.msra.mxu0 %v984
    %1937 = vmatprep.subr.bf16.mxu0 %v981
    %1938 = vmatpush1.bf16.msra.mxu0 %v980
    %1939 = vmatprep.subr.bf16.mxu0 %v977
    %1940 = vmatpush1.bf16.msra.mxu0 %v976
    %1941 = vmatprep.subr.bf16.mxu0 %v973
    %1942 = vmatpush1.bf16.msra.mxu0 %v972
    %1943 = vmatprep.subr.bf16.mxu0 %v969
    %1944 = vmatpush1.bf16.msra.mxu0 %v968
    %1945 = vmatprep.subr.bf16.mxu0 0
    %1946 = vmatpush2.bf16.msra.mxu0 0
    %1947 = vmatprep.subr.bf16.mxu0 0
    %1948 = vmatpush2.bf16.msra.mxu0 0
    %1949 = vmatprep.subr.bf16.mxu0 0
    %1950 = vmatpush2.bf16.msra.mxu0 0
    %1951 = vmatprep.subr.bf16.mxu0 0
    %1952 = vmatpush2.bf16.msra.mxu0 0
    %1953 = vmatprep.subr.bf16.mxu0 0
    %1954 = vmatpush2.bf16.msra.mxu0 0
    %1955 = vmatprep.subr.bf16.mxu0 0
    %1956 = vmatpush2.bf16.msra.mxu0 0
    %1957 = vmatprep.subr.bf16.mxu0 0
    %1958 = vmatpush2.bf16.msra.mxu0 0
    %1959 = vmatprep.subr.bf16.mxu0 0
    %1960 = vmatpush2.bf16.msra.mxu0 0
    %1961 = vmatprep.mubr.bf16.mxu0 0
    %1962 = vmatmul.mubr.bf16.gmra.mxu0 %v1927
    %v1963 = vpop.f32.mrf.mxu0
    %v1964 = vadd.f32 0.0, %v1963
    %v1965 = vpop.f32.mrf.mxu0
    %v1966 = vadd.f32 0.0, %v1965
    %v1967 = vpop.f32.mrf.mxu0
    %v1968 = vpop.f32.mrf.mxu0
    %1969 = vdwg.mxu0
    %1970 = vmatprep.subr.bf16.mxu0 %v999
    %1971 = vmatpush1.bf16.msra.mxu0 %v998
    %1972 = vmatprep.subr.bf16.mxu0 %v995
    %1973 = vmatpush1.bf16.msra.mxu0 %v994
    %1974 = vmatprep.subr.bf16.mxu0 %v991
    %1975 = vmatpush1.bf16.msra.mxu0 %v990
    %1976 = vmatprep.subr.bf16.mxu0 %v987
    %1977 = vmatpush1.bf16.msra.mxu0 %v986
    %1978 = vmatprep.subr.bf16.mxu0 %v983
    %1979 = vmatpush1.bf16.msra.mxu0 %v982
    %1980 = vmatprep.subr.bf16.mxu0 %v979
    %1981 = vmatpush1.bf16.msra.mxu0 %v978
    %1982 = vmatprep.subr.bf16.mxu0 %v975
    %1983 = vmatpush1.bf16.msra.mxu0 %v974
    %1984 = vmatprep.subr.bf16.mxu0 %v971
    %1985 = vmatpush1.bf16.msra.mxu0 %v970
    %1986 = vmatprep.subr.bf16.mxu0 0
    %1987 = vmatpush2.bf16.msra.mxu0 0
    %1988 = vmatprep.subr.bf16.mxu0 0
    %1989 = vmatpush2.bf16.msra.mxu0 0
    %1990 = vmatprep.subr.bf16.mxu0 0
    %1991 = vmatpush2.bf16.msra.mxu0 0
    %1992 = vmatprep.subr.bf16.mxu0 0
    %1993 = vmatpush2.bf16.msra.mxu0 0
    %1994 = vmatprep.subr.bf16.mxu0 0
    %1995 = vmatpush2.bf16.msra.mxu0 0
    %1996 = vmatprep.subr.bf16.mxu0 0
    %1997 = vmatpush2.bf16.msra.mxu0 0
    %1998 = vmatprep.subr.bf16.mxu0 0
    %1999 = vmatpush2.bf16.msra.mxu0 0
    %2000 = vmatprep.subr.bf16.mxu0 0
    %2001 = vmatpush2.bf16.msra.mxu0 0
    %2002 = vmatprep.mubr.bf16.mxu0 0
    %2003 = vmatmul.mubr.bf16.gmra.mxu0 %v1927
    %v2004 = vpop.f32.mrf.mxu0
    %v2005 = vadd.f32 0.0, %v2004
    %v2006 = vpop.f32.mrf.mxu0
    %v2007 = vadd.f32 0.0, %v2006
    %v2008 = vpop.f32.mrf.mxu0
    %v2009 = vpop.f32.mrf.mxu0
    %2010 = vdwg.mxu0
    %v2015 = vrot.slane %v1964, 1
    %v2016 = vrot.slane %v1966, 1
    %v2017 = vrot.slane %v2005, 1
    %v2018 = vrot.slane %v2007, 1
    %v2023 = vadd.f32 %v790, %v2015
    %v2024 = vadd.f32 %v792, %v2016
    %v2025 = vadd.f32 %v831, %v2017
    %v2026 = vadd.f32 %v833, %v2018
    %v2027 = vtanh.pop %v2023
    %v2028 = vxor.u32 %v2024, 2147483648
    %v2029 = vxor.u32 %v2025, 2147483648
    %v2030 = vxor.u32 %v2026, 2147483648
    %v2031 = vmul.f32 %v2028, 1.442695
    %v2032 = vpow.pop %v2031
    %v2033 = vmul.f32 %v2029, 1.442695
    %v2034 = vpow.pop %v2033
    %v2035 = vmul.f32 %v2030, 1.442695
    %v2036 = vpow.pop %v2035
    %v2037 = vadd.f32 %v2032, 1.0
    %v2038 = vadd.f32 %v2034, 1.0
    %v2039 = vadd.f32 %v2036, 1.0
    %v2040 = vrcp.pop %v2037
    %v2041 = vmul.f32 1.0, %v2040
    %v2042 = vrcp.pop %v2038
    %v2043 = vmul.f32 1.0, %v2042
    %v2044 = vrcp.pop %v2039
    %v2045 = vmul.f32 1.0, %v2044
    %v2047 = vrot.slane %v1921, 7
    %v2049 = vmul.f32 %v2043, %v2047
    %v2050 = vmul.f32 %v2041, %v2027
    %v2051 = vadd.f32 %v2049, %v2050
    %v2052 = vtanh.pop %v2051
    %v2053 = vmul.f32 %v2045, %v2052
    %2054 = vst [vmem:[#allocation2] sm:$0x80] %v2053
    %2055 = vst [vmem:[%s13 - $0x7] sm:$0x80] %v2053
    %2056 = vst [vmem:[%s14 - $0x7] sm:$0x80] %v2051
    %v2057 = vld [vmem:[#allocation2] sm:$0xff]
    %v2058 = vld [vmem:[%s8] sm:$0xff]
    %v2059 = vld [vmem:[%s8 + $0x8] sm:$0xff]
    %v2060 = vld [vmem:[%s8 + $0x10] sm:$0xff]
    %v2061 = vld [vmem:[%s8 + $0x18] sm:$0xff]
    %v2062 = vld [vmem:[%s8 + $0x20] sm:$0xff]
    %v2063 = vld [vmem:[%s8 + $0x28] sm:$0xff]
    %v2064 = vld [vmem:[%s8 + $0x30] sm:$0xff]
    %v2065 = vld [vmem:[%s8 + $0x38] sm:$0xff]
    %v2066 = vld [vmem:[%s8 + $0x40] sm:$0xff]
    %v2067 = vld [vmem:[%s8 + $0x48] sm:$0xff]
    %v2068 = vld [vmem:[%s8 + $0x50] sm:$0xff]
    %v2069 = vld [vmem:[%s8 + $0x58] sm:$0xff]
    %v2070 = vld [vmem:[%s8 + $0x60] sm:$0xff]
    %v2071 = vld [vmem:[%s8 + $0x68] sm:$0xff]
    %v2072 = vld [vmem:[%s8 + $0x70] sm:$0xff]
    %v2073 = vld [vmem:[%s8 + $0x78] sm:$0xff]
    %v2074 = vld [vmem:[#allocation11] sm:$0x1]
    %v2076 = vlaneseq
    %v2077 = vshrl.u32 %v2076, 7
    %v2078 = vsub.s32 0, %v2077
    %v2079 = vrot.slane %v2074, %v2078
    %2081 = vmatprep.subr.mxu0 0.0
    %2082 = vmatpush1.msra.mxu0 %v2073
    %2083 = vmatprep.subr.mxu0 0.0
    %2084 = vmatpush1.msra.mxu0 %v2072
    %2085 = vmatprep.subr.mxu0 0.0
    %2086 = vmatpush1.msra.mxu0 %v2071
    %2087 = vmatprep.subr.mxu0 0.0
    %2088 = vmatpush1.msra.mxu0 %v2070
    %2089 = vmatprep.subr.mxu0 0.0
    %2090 = vmatpush1.msra.mxu0 %v2069
    %2091 = vmatprep.subr.mxu0 0.0
    %2092 = vmatpush1.msra.mxu0 %v2068
    %2093 = vmatprep.subr.mxu0 0.0
    %2094 = vmatpush1.msra.mxu0 %v2067
    %2095 = vmatprep.subr.mxu0 0.0
    %2096 = vmatpush1.msra.mxu0 %v2066
    %2097 = vmatprep.subr.mxu0 0.0
    %2098 = vmatpush1.msra.mxu0 %v2065
    %2099 = vmatprep.subr.mxu0 0.0
    %2100 = vmatpush1.msra.mxu0 %v2064
    %2101 = vmatprep.subr.mxu0 0.0
    %2102 = vmatpush1.msra.mxu0 %v2063
    %2103 = vmatprep.subr.mxu0 0.0
    %2104 = vmatpush1.msra.mxu0 %v2062
    %2105 = vmatprep.subr.mxu0 0.0
    %2106 = vmatpush1.msra.mxu0 %v2061
    %2107 = vmatprep.subr.mxu0 0.0
    %2108 = vmatpush1.msra.mxu0 %v2060
    %2109 = vmatprep.subr.mxu0 0.0
    %2110 = vmatpush1.msra.mxu0 %v2059
    %2111 = vmatprep.subr.mxu0 0.0
    %2112 = vmatpush1.msra.mxu0 %v2058
    %2113 = vmatprep.subr.mxu0 0.0
    %2114 = vmatpush2.msra.mxu0 0.0
    %2115 = vmatprep.subr.mxu0 0.0
    %2116 = vmatpush2.msra.mxu0 0.0
    %2117 = vmatprep.subr.mxu0 0.0
    %2118 = vmatpush2.msra.mxu0 0.0
    %2119 = vmatprep.subr.mxu0 0.0
    %2120 = vmatpush2.msra.mxu0 0.0
    %2121 = vmatprep.subr.mxu0 0.0
    %2122 = vmatpush2.msra.mxu0 0.0
    %2123 = vmatprep.subr.mxu0 0.0
    %2124 = vmatpush2.msra.mxu0 0.0
    %2125 = vmatprep.subr.mxu0 0.0
    %2126 = vmatpush2.msra.mxu0 0.0
    %2127 = vmatprep.subr.mxu0 0.0
    %2128 = vmatpush2.msra.mxu0 0.0
    %2129 = vmatprep.subr.mxu0 0.0
    %2130 = vmatpush2.msra.mxu0 0.0
    %2131 = vmatprep.subr.mxu0 0.0
    %2132 = vmatpush2.msra.mxu0 0.0
    %2133 = vmatprep.subr.mxu0 0.0
    %2134 = vmatpush2.msra.mxu0 0.0
    %2135 = vmatprep.subr.mxu0 0.0
    %2136 = vmatpush2.msra.mxu0 0.0
    %2137 = vmatprep.subr.mxu0 0.0
    %2138 = vmatpush2.msra.mxu0 0.0
    %2139 = vmatprep.subr.mxu0 0.0
    %2140 = vmatpush2.msra.mxu0 0.0
    %2141 = vmatprep.subr.mxu0 0.0
    %2142 = vmatpush2.msra.mxu0 0.0
    %2143 = vmatprep.subr.mxu0 0.0
    %2144 = vmatpush2.msra.mxu0 0.0
    %2145 = vmatprep.mubr.f32.mxu0 0.0
    %2146 = vmatmul.mubr.f32.gmra.mxu0 %v2057
    %v2147 = vpop.f32.mrf.mxu0
    %v2148 = vadd.f32 %v2079, %v2147
    %v2149 = vpop.f32.mrf.mxu0
    %2150 = vdwg.mxu0
    %vm2151 = vcmask 31744
    %v2152 = vsel %vm2151, %v2148, -inf
    %2153 = vmax.xlane.f32.xlu0 %v2152
    %v2154 = vpop.xlane.xlu0 %2153
    %v2155 = vsub.f32 %v2148, %v2154
    %v2156 = vmul.f32 %v2155, 1.442695
    %v2157 = vpow.pop %v2156
    %v2158 = vsel %vm2151, %v2157, 0.0
    %2159 = vadd.xlane.f32.xlu0 %v2158
    %v2160 = vpop.xlane.xlu0 %2159
    %v2161 = vrcp.pop %v2160
    %v2162 = vmul.f32 %v2157, %v2161
    %2163 = vst.msk [vmem:[%s12] sm:$0xff] %vm2151, %v2162
    // Predicated region
    $region74: #{_actor_forward.1} parent=1 // pred_check
      _
    $region75: #{_actor_forward.1} parent=1 // pred_check_branch
      %2165 = sbr.rel (0) target = $region77
    $region76: #{_actor_forward.1} parent=1 // pred_region
      _
    $region77: #{_actor_forward.1} parent=1 // pred_fallthru
      _
    // Predicated region
    $region78: #{_actor_forward.1} parent=1 // pred_check
      _
    $region79: #{_actor_forward.1} parent=1 // pred_check_branch
      %2167 = sbr.rel (0) target = $region81
    $region80: #{_actor_forward.1} parent=1 // pred_region
      _
    $region81: #{_actor_forward.1} parent=1 // pred_fallthru
      _
    // Predicated region
    $region82: #{_actor_forward.1} parent=1 // pred_check
      _
    $region83: #{_actor_forward.1} parent=1 // pred_check_branch
      %2169 = sbr.rel (0) target = $region85
    $region84: #{_actor_forward.1} parent=1 // pred_region
      _
    $region85: #{_actor_forward.1} parent=1 // pred_fallthru
      _
    // Predicated region
    $region86: #{_actor_forward.1} parent=1 // pred_check
      _
    $region87: #{_actor_forward.1} parent=1 // pred_check_branch
      %2171 = sbr.rel (0) target = $region89
    $region88: #{_actor_forward.1} parent=1 // pred_region
      _
    $region89: #{_actor_forward.1} parent=1 // pred_fallthru
      _
    // Predicated region
    $region90: #{_actor_forward.1} parent=1 // pred_check
      _
    $region91: #{_actor_forward.1} parent=1 // pred_check_branch
      %2173 = sbr.rel (0) target = $region93
    $region92: #{_actor_forward.1} parent=1 // pred_region
      _
    $region93: #{_actor_forward.1} parent=1 // pred_fallthru
      _
    // Predicated region
    $region94: #{_actor_forward.1} parent=1 // pred_check
      _
    $region95: #{_actor_forward.1} parent=1 // pred_check_branch
      %2175 = sbr.rel (0) target = $region97
    $region96: #{_actor_forward.1} parent=1 // pred_region
      _
    $region97: #{_actor_forward.1} parent=1 // pred_fallthru
      _
    %2176 = vsyncpa [#allocation4], 1
    %2177 = vsyncpa [#allocation6], 1
    %2178 = vsyncpa [#allocation9], 1
    %2179 = vsyncpa [#allocation12], 1

</llo_original>
